<compile_context>
chip_gen: v7x
topology: tpu7x:2x2x1
jax: 0.10.0
libtpu: 0.0.40
codegen_flags: <defaults>
</compile_context>

<pallas_src>
import functools

import jax
import jax.numpy as jnp
from jax.experimental import pallas as pl
from jax.experimental.pallas import tpu as pltpu


def _expand_shuffle_ln_kernel(x_ref, w_ref, g_ref, gtg_ref, beta_ref, o_ref, *,
                              dim_scale, cout, c_exp, eps):
    """Fused expand-Linear + pixel-shuffle + group-LayerNorm for one row strip.

    x_ref:    (th, W, C)           input pixels (native dtype; cast in-kernel)
    w_ref:    (C, 4C+groups)       [expand weight | per-group column sums]
    g_ref:    (4C+groups, groups)  0/1 group matrix (zero rows on extra cols)
    gtg_ref:  (groups, 4C+groups)  group->column broadcast with gamma baked in
    beta_ref: (1, 4C+groups)       beta tiled across groups (f32, zero padded)
    o_ref:    (th, ds, W, ds*cout) pixel-shuffled output tile
    """
    th, W, C = x_ref.shape
    ds = dim_scale
    gsz = ds * cout                       # width of one p1 slab (== C)
    M = th * W
    cd = w_ref.dtype                      # matmul-operand (compute) dtype

    # (th, W, C) -> (th*W, C): leading-dim merge only (free when W % 8 == 0).
    x = x_ref[...].reshape(M, C).astype(cd)

    # Main GEMM on the MXU (f32 accumulation).  Last `groups` columns hold the
    # per-group sums of y (mean folded into the weight in the wrapper).
    y = jnp.dot(x, w_ref[...], preferred_element_type=jnp.float32)  # (M, 4C+g)

    inv_cout = 1.0 / float(cout)
    mean = y[:, c_exp:] * inv_cout                                   # (M, g)

    # Variance: E[y^2] - mean^2.  y^2 is reduced per-group with a small
    # compute-dtype matmul (lane-dense, MXU-native); extra columns contribute
    # nothing because their g_ref rows are zero.
    sq = jnp.dot((y * y).astype(cd), g_ref[...],
                 preferred_element_type=jnp.float32) * inv_cout      # (M, g)
    var = jnp.maximum(sq - mean * mean, 0.0)
    inv = jax.lax.rsqrt(var + eps)                                   # EUP

    # Broadcast per-group (inv*gamma) and (mean*inv*gamma) back across their
    # cout columns via small MXU matmuls (gamma baked into gtg_ref).
    scale_b = jnp.dot(inv.astype(cd), gtg_ref[...],
                      preferred_element_type=jnp.float32)            # (M, 4C+g)
    shift_b = jnp.dot((mean * inv).astype(cd), gtg_ref[...],
                      preferred_element_type=jnp.float32)            # (M, 4C+g)

    out = (y * scale_b + (beta_ref[...] - shift_b)).astype(o_ref.dtype)

    # Pixel shuffle on the VMEM tile: expanded column slab p1 of pixel (t, w)
    # becomes output sub-row p1 of that pixel.  Static lane slice + leading-dim
    # split only; the wrapper's final reshape is then a pure view.
    for p1 in range(ds):
        o_ref[:, p1, :, :] = out[:, p1 * gsz:(p1 + 1) * gsz].reshape(th, W, gsz)


def final_patch_expand_2d(x, w_expand, gamma, beta, *, dim_scale=4, eps=1e-5,
                          tm=512, compute_dtype=jnp.bfloat16, out_dtype=None,
                          vmem_budget_bytes=20 * 1024 * 1024,
                          vmem_limit_bytes=None):
    """x: (B,H,W,C).  w_expand: (dim_scale*C, C) (PyTorch Linear layout).
    gamma, beta: (C // dim_scale,).  Returns (B, H*ds, W*ds, C//ds).

    compute_dtype: matmul-operand precision (bf16 default for MXU throughput;
      pass jnp.float32 for full f32 semantics).  Accumulation is always f32.
    out_dtype: output dtype (defaults to x.dtype; bf16 halves the dominant
      output HBM stream on memory-bound v5e/v6e configs -- semantics change).
    vmem_budget_bytes: per-step live-VMEM target used to size the row strip
      (20 MiB default is v7x-safe; raise together with vmem_limit_bytes and
      tm on v5e/v6e where 128 MiB of physical VMEM is available)."""
    B, H, W, C = x.shape
    ds = dim_scale
    assert C % ds == 0, "dim must be divisible by dim_scale (module requirement)"
    cout = C // ds
    groups = ds * ds
    C_exp = ds * C
    C_aug = C_exp + groups            # main GEMM width incl. folded group sums
    gsz = ds * cout                   # == C, width of one p1 output slab
    out_dtype = x.dtype if out_dtype is None else out_dtype

    BH = B * H
    x3 = x.reshape(BH, W, C)          # view; cast to compute_dtype in-kernel

    # ---- constant operands -------------------------------------------------
    # Expanded channel o corresponds to (p1, p2, c) with c fastest.
    w_t = jnp.transpose(w_expand).astype(compute_dtype)              # (C, 4C)
    col_group = jnp.arange(C_exp, dtype=jnp.int32) // cout
    G_small = (col_group[:, None] == jnp.arange(groups, dtype=jnp.int32)[None, :]
               ).astype(jnp.float32)                                  # (4C, g)
    # Fold the per-group column sums into the weight -> mean comes out of the
    # main GEMM for free.
    Wg = jnp.dot(w_t.astype(jnp.float32), G_small).astype(compute_dtype)  # (C, g)
    w_aug = jnp.concatenate([w_t, Wg], axis=1)                        # (C, 4C+g)

    # Group matrix for the variance reduction (zero rows under the extra sum
    # columns so they contribute nothing).
    G = jnp.concatenate([G_small, jnp.zeros((groups, groups), jnp.float32)],
                        axis=0).astype(compute_dtype)                 # (4C+g, g)

    # Broadcast matrix with gamma baked in; beta tiled to the expanded width.
    gamma_t = jnp.tile(gamma.astype(jnp.float32), groups)             # (4C,)
    Gt_g = (G_small * gamma_t[:, None]).T                             # (g, 4C)
    Gt_g = jnp.concatenate([Gt_g, jnp.zeros((groups, groups), jnp.float32)],
                           axis=1).astype(compute_dtype)              # (g, 4C+g)
    beta_t = jnp.concatenate(
        [jnp.tile(beta.astype(jnp.float32), groups),
         jnp.zeros((groups,), jnp.float32)]).reshape(1, C_aug)        # (1, 4C+g)

    # ---- tile sizing (VMEM-budgeted, >= 8 grid steps when possible) --------
    f32b = 4
    per_pixel_bytes = (
        5 * C_aug * f32b                               # live f32 temporaries
        + 2 * C * jnp.dtype(x.dtype).itemsize          # double-buffered input
        + 2 * C_exp * jnp.dtype(out_dtype).itemsize)   # double-buffered output
    const_bytes = ((C * C_aug + 2 * groups * C_aug + C_aug)
                   * jnp.dtype(compute_dtype).itemsize)
    budget = max(int(vmem_budget_bytes) - 2 * const_bytes,
                 per_pixel_bytes * max(W, 8))
    pix = max(W, min(int(tm), budget // per_pixel_bytes))
    th = max(1, min(BH, pix // W))
    if BH >= 8:                        # keep >= 8 steps (>= 4 per TC on v7x)
        th = min(th, max(1, BH // 8))
    num_steps = pl.cdiv(BH, th)

    kernel = functools.partial(_expand_shuffle_ln_kernel, dim_scale=ds,
                               cout=cout, c_exp=C_exp, eps=eps)

    def _const_spec(shape, single_buffer):
        n = len(shape)
        idx = lambda i, _n=n: (0,) * _n
        if single_buffer:
            # Grid-invariant operands: no pipelining needed, single-buffer.
            return pl.BlockSpec(shape, idx, pipeline_mode=pl.Buffered(1))
        return pl.BlockSpec(shape, idx)

    def _call(single_buffer_consts):
        in_specs = [
            pl.BlockSpec((th, W, C), lambda i: (i, 0, 0)),
            _const_spec((C, C_aug), single_buffer_consts),
            _const_spec((C_aug, groups), single_buffer_consts),
            _const_spec((groups, C_aug), single_buffer_consts),
            _const_spec((1, C_aug), single_buffer_consts),
        ]
        # Output laid out as (B*H, p1, W, p2*cout): the kernel writes the pixel
        # shuffle directly, so the reshape below is a pure view.
        return pl.pallas_call(
            kernel,
            out_shape=jax.ShapeDtypeStruct((BH, ds, W, gsz), out_dtype),
            grid_spec=pltpu.PrefetchScalarGridSpec(
                num_scalar_prefetch=0,
                grid=(num_steps,),
                in_specs=in_specs,
                out_specs=pl.BlockSpec((th, ds, W, gsz),
                                       lambda i: (i, 0, 0, 0)),
            ),
            compiler_params=pltpu.CompilerParams(
                dimension_semantics=("parallel",),
                vmem_limit_bytes=vmem_limit_bytes),
        )(x3, w_aug, G, Gt_g, beta_t)

    if hasattr(pl, "Buffered"):
        try:
            y = _call(True)
        except Exception:          # pipeline_mode unsupported -> default bufs
            y = _call(False)
    else:
        y = _call(False)

    return y.reshape(B, H * ds, W * ds, cout)


def _reference(x, w_expand, gamma, beta, dim_scale=4, eps=1e-5,
               matmul_dtype=None):
    """Pure-JAX mirror of the PyTorch module.  If matmul_dtype is given, the
    Linear operands are cast to it first (to match the kernel's MXU feed)."""
    B, H, W, C = x.shape
    ds = dim_scale
    cout = C // ds
    if matmul_dtype is None:
        xm, wm = x, w_expand
        precision = jax.lax.Precision.HIGHEST
    else:
        xm, wm = x.astype(matmul_dtype), w_expand.astype(matmul_dtype)
        precision = None
    y = jnp.einsum("bhwc,oc->bhwo", xm, wm,
                   preferred_element_type=jnp.float32, precision=precision)
    y = y.reshape(B, H, W, ds, ds, cout)
    y = jnp.transpose(y, (0, 1, 3, 2, 4, 5)).reshape(B, H * ds, W * ds, cout)
    mean = jnp.mean(y, axis=-1, keepdims=True)
    var = jnp.mean((y - mean) ** 2, axis=-1, keepdims=True)
    return (y - mean) * jax.lax.rsqrt(var + eps) * gamma + beta


if __name__ == "__main__":
    key = jax.random.PRNGKey(0)
    kx, kw, kg, kb = jax.random.split(key, 4)

    B, H, W, C = 2, 8, 8, 32          # dim = 32, dim_scale = 4 -> out channels 8
    ds = 4

    x = jax.random.normal(kx, (B, H, W, C), dtype=jnp.float32)
    # nn.Linear(dim, dim_scale*dim, bias=False) weight: (4C, C)
    w_expand = jax.random.normal(kw, (ds * C, C), dtype=jnp.float32) * 0.05
    # LayerNorm(dim // dim_scale) affine params (deterministic, non-trivial)
    gamma = 1.0 + 0.1 * jax.random.normal(kg, (C // ds,), dtype=jnp.float32)
    beta = 0.1 * jax.random.normal(kb, (C // ds,), dtype=jnp.float32)

    out = final_patch_expand_2d(x, w_expand, gamma, beta, dim_scale=ds)
    out = jax.block_until_ready(out)
    assert out.shape == (B, H * ds, W * ds, C // ds), out.shape

    # Check 1 (kernel logic): reference with the SAME bf16 matmul-operand cast
    # as the kernel -> remaining gap is bf16 stats/broadcast + accumulation
    # order (~1% relative on the normalized values).
    ref_bf16 = _reference(x, w_expand, gamma, beta, dim_scale=ds,
                          matmul_dtype=jnp.bfloat16)
    assert jnp.allclose(out, ref_bf16, atol=3e-2, rtol=3e-2), (
        "kernel vs bf16-matched reference, max abs diff = "
        f"{float(jnp.max(jnp.abs(out - ref_bf16)))}")

    # Check 2 (module semantics): full-f32 reference; the only extra gap is the
    # deliberate bf16 MXU feed, so a modest tolerance suffices.
    ref_f32 = _reference(x, w_expand, gamma, beta, dim_scale=ds)
    assert jnp.allclose(out, ref_f32, atol=8e-2, rtol=8e-2), (
        "kernel vs f32 module reference, max abs diff = "
        f"{float(jnp.max(jnp.abs(out - ref_f32)))}")

    print("KERNEL_OK")
</pallas_src>

<mosaic_0001>
module attributes {stable_mosaic.version = 11 : i64} {
  func.func @_expand_shuffle_ln_kernel(%arg0: i32, %arg1: memref<2x8x32xf32, #tpu.memory_space<vmem>>, %arg2: memref<32x144xbf16, #tpu.memory_space<vmem>>, %arg3: memref<144x16xbf16, #tpu.memory_space<vmem>>, %arg4: memref<16x144xbf16, #tpu.memory_space<vmem>>, %arg5: memref<1x144xf32, #tpu.memory_space<vmem>>, %arg6: memref<2x4x8x32xf32, #tpu.memory_space<vmem>>) attributes {dimension_semantics = [#tpu.dimension_semantics<parallel>], iteration_bounds = array<i64: 8>, scalar_prefetch = 0 : i64, scratch_operands = 0 : i64, tpu.core_type = #tpu.core_type<tc>, window_params = [{transform_indices = @transform_0, window_bounds = array<i64: 2, 8, 32>}, {pipeline_mode = #tpu.pipeline_mode<synchronous>, transform_indices = @transform_1, window_bounds = array<i64: 32, 144>}, {pipeline_mode = #tpu.pipeline_mode<synchronous>, transform_indices = @transform_2, window_bounds = array<i64: 144, 16>}, {pipeline_mode = #tpu.pipeline_mode<synchronous>, transform_indices = @transform_3, window_bounds = array<i64: 16, 144>}, {pipeline_mode = #tpu.pipeline_mode<synchronous>, transform_indices = @transform_4, window_bounds = array<i64: 1, 144>}, {transform_indices = @transform_5, window_bounds = array<i64: 2, 4, 8, 32>}]} {
    %c0 = arith.constant 0 : index
    %c0_0 = arith.constant 0 : index
    %c0_1 = arith.constant 0 : index
    %0 = vector.load %arg1[%c0, %c0_0, %c0_1] : memref<2x8x32xf32, #tpu.memory_space<vmem>>, vector<2x8x32xf32>
    %1 = vector.shape_cast %0 : vector<2x8x32xf32> to vector<16x32xf32>
    %2 = arith.truncf %1 : vector<16x32xf32> to vector<16x32xbf16>
    %c0_2 = arith.constant 0 : index
    %c0_3 = arith.constant 0 : index
    %3 = vector.load %arg2[%c0_2, %c0_3] : memref<32x144xbf16, #tpu.memory_space<vmem>>, vector<32x144xbf16>
    %cst = arith.constant dense<0.000000e+00> : vector<16x144xf32>
    %4 = tpu.matmul %2, %3, %cst {dimension_numbers = #tpu.dot_dimension_numbers<[1], [0], [0], [1], [0, 0, 1, 1], [], []>} : vector<16x32xbf16>, vector<32x144xbf16>, vector<16x144xf32> -> vector<16x144xf32>
    %5 = vector.extract_strided_slice %4 {offsets = [0, 128], sizes = [16, 16], strides = [1, 1]} : vector<16x144xf32> to vector<16x16xf32>
    %cst_4 = arith.constant 1.250000e-01 : f32
    %6 = vector.broadcast %cst_4 : f32 to vector<16x16xf32>
    %7 = arith.mulf %5, %6 : vector<16x16xf32>
    %8 = arith.mulf %4, %4 : vector<16x144xf32>
    %9 = arith.truncf %8 : vector<16x144xf32> to vector<16x144xbf16>
    %c0_5 = arith.constant 0 : index
    %c0_6 = arith.constant 0 : index
    %10 = vector.load %arg3[%c0_5, %c0_6] : memref<144x16xbf16, #tpu.memory_space<vmem>>, vector<144x16xbf16>
    %cst_7 = arith.constant dense<0.000000e+00> : vector<16x16xf32>
    %11 = tpu.matmul %9, %10, %cst_7 {dimension_numbers = #tpu.dot_dimension_numbers<[1], [0], [0], [1], [0, 0, 1, 1], [], []>} : vector<16x144xbf16>, vector<144x16xbf16>, vector<16x16xf32> -> vector<16x16xf32>
    %cst_8 = arith.constant 1.250000e-01 : f32
    %12 = vector.broadcast %cst_8 : f32 to vector<16x16xf32>
    %13 = arith.mulf %11, %12 : vector<16x16xf32>
    %14 = arith.mulf %7, %7 : vector<16x16xf32>
    %15 = arith.subf %13, %14 : vector<16x16xf32>
    %cst_9 = arith.constant 0.000000e+00 : f32
    %16 = vector.broadcast %cst_9 : f32 to vector<16x16xf32>
    %17 = arith.maximumf %15, %16 : vector<16x16xf32>
    %cst_10 = arith.constant 9.99999974E-6 : f32
    %18 = vector.broadcast %cst_10 : f32 to vector<16x16xf32>
    %19 = arith.addf %17, %18 : vector<16x16xf32>
    %20 = math.rsqrt %19 : vector<16x16xf32>
    %21 = arith.truncf %20 : vector<16x16xf32> to vector<16x16xbf16>
    %c0_11 = arith.constant 0 : index
    %c0_12 = arith.constant 0 : index
    %22 = vector.load %arg4[%c0_11, %c0_12] : memref<16x144xbf16, #tpu.memory_space<vmem>>, vector<16x144xbf16>
    %cst_13 = arith.constant dense<0.000000e+00> : vector<16x144xf32>
    %23 = tpu.matmul %21, %22, %cst_13 {dimension_numbers = #tpu.dot_dimension_numbers<[1], [0], [0], [1], [0, 0, 1, 1], [], []>} : vector<16x16xbf16>, vector<16x144xbf16>, vector<16x144xf32> -> vector<16x144xf32>
    %24 = arith.mulf %7, %20 : vector<16x16xf32>
    %25 = arith.truncf %24 : vector<16x16xf32> to vector<16x16xbf16>
    %c0_14 = arith.constant 0 : index
    %c0_15 = arith.constant 0 : index
    %26 = vector.load %arg4[%c0_14, %c0_15] : memref<16x144xbf16, #tpu.memory_space<vmem>>, vector<16x144xbf16>
    %cst_16 = arith.constant dense<0.000000e+00> : vector<16x144xf32>
    %27 = tpu.matmul %25, %26, %cst_16 {dimension_numbers = #tpu.dot_dimension_numbers<[1], [0], [0], [1], [0, 0, 1, 1], [], []>} : vector<16x16xbf16>, vector<16x144xbf16>, vector<16x144xf32> -> vector<16x144xf32>
    %28 = arith.mulf %4, %23 : vector<16x144xf32>
    %c0_17 = arith.constant 0 : index
    %c0_18 = arith.constant 0 : index
    %29 = vector.load %arg5[%c0_17, %c0_18] : memref<1x144xf32, #tpu.memory_space<vmem>>, vector<1x144xf32>
    %30 = vector.broadcast %29 : vector<1x144xf32> to vector<16x144xf32>
    %31 = arith.subf %30, %27 : vector<16x144xf32>
    %32 = arith.addf %28, %31 : vector<16x144xf32>
    %33 = vector.extract_strided_slice %32 {offsets = [0, 0], sizes = [16, 32], strides = [1, 1]} : vector<16x144xf32> to vector<16x32xf32>
    %34 = vector.shape_cast %33 : vector<16x32xf32> to vector<2x8x32xf32>
    %c0_19 = arith.constant 0 : index
    %c0_20 = arith.constant 0 : index
    %c0_21 = arith.constant 0 : index
    %c0_22 = arith.constant 0 : index
    %35 = vector.load %arg6[%c0_19, %c0_20, %c0_21, %c0_22] : memref<2x4x8x32xf32, #tpu.memory_space<vmem>>, vector<2x1x8x32xf32>
    %36 = vector.shape_cast %35 : vector<2x1x8x32xf32> to vector<2x8x32xf32>
    %37 = vector.shape_cast %34 : vector<2x8x32xf32> to vector<2x1x8x32xf32>
    tpu.vector_store %arg6[%c0_19, %c0_20, %c0_21, %c0_22], %37 {strides = array<i32>} : memref<2x4x8x32xf32, #tpu.memory_space<vmem>>, vector<2x1x8x32xf32>,
    %38 = vector.extract_strided_slice %32 {offsets = [0, 32], sizes = [16, 32], strides = [1, 1]} : vector<16x144xf32> to vector<16x32xf32>
    %39 = vector.shape_cast %38 : vector<16x32xf32> to vector<2x8x32xf32>
    %c0_23 = arith.constant 0 : index
    %c1 = arith.constant 1 : index
    %c0_24 = arith.constant 0 : index
    %c0_25 = arith.constant 0 : index
    %40 = vector.load %arg6[%c0_23, %c1, %c0_24, %c0_25] : memref<2x4x8x32xf32, #tpu.memory_space<vmem>>, vector<2x1x8x32xf32>
    %41 = vector.shape_cast %40 : vector<2x1x8x32xf32> to vector<2x8x32xf32>
    %42 = vector.shape_cast %39 : vector<2x8x32xf32> to vector<2x1x8x32xf32>
    tpu.vector_store %arg6[%c0_23, %c1, %c0_24, %c0_25], %42 {strides = array<i32>} : memref<2x4x8x32xf32, #tpu.memory_space<vmem>>, vector<2x1x8x32xf32>,
    %43 = vector.extract_strided_slice %32 {offsets = [0, 64], sizes = [16, 32], strides = [1, 1]} : vector<16x144xf32> to vector<16x32xf32>
    %44 = vector.shape_cast %43 : vector<16x32xf32> to vector<2x8x32xf32>
    %c0_26 = arith.constant 0 : index
    %c2 = arith.constant 2 : index
    %c0_27 = arith.constant 0 : index
    %c0_28 = arith.constant 0 : index
    %45 = vector.load %arg6[%c0_26, %c2, %c0_27, %c0_28] : memref<2x4x8x32xf32, #tpu.memory_space<vmem>>, vector<2x1x8x32xf32>
    %46 = vector.shape_cast %45 : vector<2x1x8x32xf32> to vector<2x8x32xf32>
    %47 = vector.shape_cast %44 : vector<2x8x32xf32> to vector<2x1x8x32xf32>
    tpu.vector_store %arg6[%c0_26, %c2, %c0_27, %c0_28], %47 {strides = array<i32>} : memref<2x4x8x32xf32, #tpu.memory_space<vmem>>, vector<2x1x8x32xf32>,
    %48 = vector.extract_strided_slice %32 {offsets = [0, 96], sizes = [16, 32], strides = [1, 1]} : vector<16x144xf32> to vector<16x32xf32>
    %49 = vector.shape_cast %48 : vector<16x32xf32> to vector<2x8x32xf32>
    %c0_29 = arith.constant 0 : index
    %c3 = arith.constant 3 : index
    %c0_30 = arith.constant 0 : index
    %c0_31 = arith.constant 0 : index
    %50 = vector.load %arg6[%c0_29, %c3, %c0_30, %c0_31] : memref<2x4x8x32xf32, #tpu.memory_space<vmem>>, vector<2x1x8x32xf32>
    %51 = vector.shape_cast %50 : vector<2x1x8x32xf32> to vector<2x8x32xf32>
    %52 = vector.shape_cast %49 : vector<2x8x32xf32> to vector<2x1x8x32xf32>
    tpu.vector_store %arg6[%c0_29, %c3, %c0_30, %c0_31], %52 {strides = array<i32>} : memref<2x4x8x32xf32, #tpu.memory_space<vmem>>, vector<2x1x8x32xf32>,
    return
  }
  func.func @transform_0(%arg0: i32) -> (i32, i32, i32) {
    %c0_i32 = arith.constant 0 : i32
    %c0_i32_0 = arith.constant 0 : i32
    %c0_i32_1 = arith.constant 0 : i32
    return %arg0, %c0_i32, %c0_i32_0 : i32, i32, i32
  }
  func.func @transform_1(%arg0: i32) -> (i32, i32) {
    %c0_i32 = arith.constant 0 : i32
    %c0_i32_0 = arith.constant 0 : i32
    %c0_i32_1 = arith.constant 0 : i32
    return %c0_i32, %c0_i32_0 : i32, i32
  }
  func.func @transform_2(%arg0: i32) -> (i32, i32) {
    %c0_i32 = arith.constant 0 : i32
    %c0_i32_0 = arith.constant 0 : i32
    %c0_i32_1 = arith.constant 0 : i32
    return %c0_i32, %c0_i32_0 : i32, i32
  }
  func.func @transform_3(%arg0: i32) -> (i32, i32) {
    %c0_i32 = arith.constant 0 : i32
    %c0_i32_0 = arith.constant 0 : i32
    %c0_i32_1 = arith.constant 0 : i32
    return %c0_i32, %c0_i32_0 : i32, i32
  }
  func.func @transform_4(%arg0: i32) -> (i32, i32) {
    %c0_i32 = arith.constant 0 : i32
    %c0_i32_0 = arith.constant 0 : i32
    %c0_i32_1 = arith.constant 0 : i32
    return %c0_i32, %c0_i32_0 : i32, i32
  }
  func.func @transform_5(%arg0: i32) -> (i32, i32, i32, i32) {
    %c0_i32 = arith.constant 0 : i32
    %c0_i32_0 = arith.constant 0 : i32
    %c0_i32_1 = arith.constant 0 : i32
    %c0_i32_2 = arith.constant 0 : i32
    return %arg0, %c0_i32, %c0_i32_0, %c0_i32_1 : i32, i32, i32, i32
  }
}

module attributes {stable_mosaic.version = 11 : i64} {
  func.func @_expand_shuffle_ln_kernel(%arg0: i32, %arg1: memref<2x8x32xf32, #tpu.memory_space<vmem>>, %arg2: memref<32x144xbf16, #tpu.memory_space<vmem>>, %arg3: memref<144x16xbf16, #tpu.memory_space<vmem>>, %arg4: memref<16x144xbf16, #tpu.memory_space<vmem>>, %arg5: memref<1x144xf32, #tpu.memory_space<vmem>>, %arg6: memref<2x4x8x32xf32, #tpu.memory_space<vmem>>) attributes {dimension_semantics = [#tpu.dimension_semantics<parallel>], iteration_bounds = array<i64: 8>, scalar_prefetch = 0 : i64, scratch_operands = 0 : i64, tpu.core_type = #tpu.core_type<tc>, window_params = [{transform_indices = @transform_0, window_bounds = array<i64: 2, 8, 32>}, {pipeline_mode = #tpu.pipeline_mode<synchronous>, transform_indices = @transform_1, window_bounds = array<i64: 32, 144>}, {pipeline_mode = #tpu.pipeline_mode<synchronous>, transform_indices = @transform_2, window_bounds = array<i64: 144, 16>}, {pipeline_mode = #tpu.pipeline_mode<synchronous>, transform_indices = @transform_3, window_bounds = array<i64: 16, 144>}, {pipeline_mode = #tpu.pipeline_mode<synchronous>, transform_indices = @transform_4, window_bounds = array<i64: 1, 144>}, {transform_indices = @transform_5, window_bounds = array<i64: 2, 4, 8, 32>}]} {
    %c0 = arith.constant 0 : index
    %c0_0 = arith.constant 0 : index
    %c0_1 = arith.constant 0 : index
    %0 = vector.load %arg1[%c0, %c0_0, %c0_1] : memref<2x8x32xf32, #tpu.memory_space<vmem>>, vector<2x8x32xf32>
    %1 = vector.shape_cast %0 : vector<2x8x32xf32> to vector<16x32xf32>
    %2 = arith.truncf %1 : vector<16x32xf32> to vector<16x32xbf16>
    %c0_2 = arith.constant 0 : index
    %c0_3 = arith.constant 0 : index
    %3 = vector.load %arg2[%c0_2, %c0_3] : memref<32x144xbf16, #tpu.memory_space<vmem>>, vector<32x144xbf16>
    %cst = arith.constant dense<0.000000e+00> : vector<16x144xf32>
    %4 = tpu.matmul %2, %3, %cst {dimension_numbers = #tpu.dot_dimension_numbers<[1], [0], [0], [1], [0, 0, 1, 1], [], []>} : vector<16x32xbf16>, vector<32x144xbf16>, vector<16x144xf32> -> vector<16x144xf32>
    %5 = vector.extract_strided_slice %4 {offsets = [0, 128], sizes = [16, 16], strides = [1, 1]} : vector<16x144xf32> to vector<16x16xf32>
    %cst_4 = arith.constant 1.250000e-01 : f32
    %6 = vector.broadcast %cst_4 : f32 to vector<16x16xf32>
    %7 = arith.mulf %5, %6 : vector<16x16xf32>
    %8 = arith.mulf %4, %4 : vector<16x144xf32>
    %9 = arith.truncf %8 : vector<16x144xf32> to vector<16x144xbf16>
    %c0_5 = arith.constant 0 : index
    %c0_6 = arith.constant 0 : index
    %10 = vector.load %arg3[%c0_5, %c0_6] : memref<144x16xbf16, #tpu.memory_space<vmem>>, vector<144x16xbf16>
    %cst_7 = arith.constant dense<0.000000e+00> : vector<16x16xf32>
    %11 = tpu.matmul %9, %10, %cst_7 {dimension_numbers = #tpu.dot_dimension_numbers<[1], [0], [0], [1], [0, 0, 1, 1], [], []>} : vector<16x144xbf16>, vector<144x16xbf16>, vector<16x16xf32> -> vector<16x16xf32>
    %cst_8 = arith.constant 1.250000e-01 : f32
    %12 = vector.broadcast %cst_8 : f32 to vector<16x16xf32>
    %13 = arith.mulf %11, %12 : vector<16x16xf32>
    %14 = arith.mulf %7, %7 : vector<16x16xf32>
    %15 = arith.subf %13, %14 : vector<16x16xf32>
    %cst_9 = arith.constant 0.000000e+00 : f32
    %16 = vector.broadcast %cst_9 : f32 to vector<16x16xf32>
    %17 = arith.maximumf %15, %16 : vector<16x16xf32>
    %cst_10 = arith.constant 9.99999974E-6 : f32
    %18 = vector.broadcast %cst_10 : f32 to vector<16x16xf32>
    %19 = arith.addf %17, %18 : vector<16x16xf32>
    %20 = math.rsqrt %19 : vector<16x16xf32>
    %21 = arith.truncf %20 : vector<16x16xf32> to vector<16x16xbf16>
    %c0_11 = arith.constant 0 : index
    %c0_12 = arith.constant 0 : index
    %22 = vector.load %arg4[%c0_11, %c0_12] : memref<16x144xbf16, #tpu.memory_space<vmem>>, vector<16x144xbf16>
    %cst_13 = arith.constant dense<0.000000e+00> : vector<16x144xf32>
    %23 = tpu.matmul %21, %22, %cst_13 {dimension_numbers = #tpu.dot_dimension_numbers<[1], [0], [0], [1], [0, 0, 1, 1], [], []>} : vector<16x16xbf16>, vector<16x144xbf16>, vector<16x144xf32> -> vector<16x144xf32>
    %24 = arith.mulf %7, %20 : vector<16x16xf32>
    %25 = arith.truncf %24 : vector<16x16xf32> to vector<16x16xbf16>
    %c0_14 = arith.constant 0 : index
    %c0_15 = arith.constant 0 : index
    %26 = vector.load %arg4[%c0_14, %c0_15] : memref<16x144xbf16, #tpu.memory_space<vmem>>, vector<16x144xbf16>
    %cst_16 = arith.constant dense<0.000000e+00> : vector<16x144xf32>
    %27 = tpu.matmul %25, %26, %cst_16 {dimension_numbers = #tpu.dot_dimension_numbers<[1], [0], [0], [1], [0, 0, 1, 1], [], []>} : vector<16x16xbf16>, vector<16x144xbf16>, vector<16x144xf32> -> vector<16x144xf32>
    %28 = arith.mulf %4, %23 : vector<16x144xf32>
    %c0_17 = arith.constant 0 : index
    %c0_18 = arith.constant 0 : index
    %29 = vector.load %arg5[%c0_17, %c0_18] : memref<1x144xf32, #tpu.memory_space<vmem>>, vector<1x144xf32>
    %30 = vector.broadcast %29 : vector<1x144xf32> to vector<16x144xf32>
    %31 = arith.subf %30, %27 : vector<16x144xf32>
    %32 = arith.addf %28, %31 : vector<16x144xf32>
    %33 = vector.extract_strided_slice %32 {offsets = [0, 0], sizes = [16, 32], strides = [1, 1]} : vector<16x144xf32> to vector<16x32xf32>
    %34 = vector.shape_cast %33 : vector<16x32xf32> to vector<2x8x32xf32>
    %c0_19 = arith.constant 0 : index
    %c0_20 = arith.constant 0 : index
    %c0_21 = arith.constant 0 : index
    %c0_22 = arith.constant 0 : index
    %35 = vector.load %arg6[%c0_19, %c0_20, %c0_21, %c0_22] : memref<2x4x8x32xf32, #tpu.memory_space<vmem>>, vector<2x1x8x32xf32>
    %36 = vector.shape_cast %35 : vector<2x1x8x32xf32> to vector<2x8x32xf32>
    %37 = vector.shape_cast %34 : vector<2x8x32xf32> to vector<2x1x8x32xf32>
    tpu.vector_store %arg6[%c0_19, %c0_20, %c0_21, %c0_22], %37 {strides = array<i32>} : memref<2x4x8x32xf32, #tpu.memory_space<vmem>>, vector<2x1x8x32xf32>,
    %38 = vector.extract_strided_slice %32 {offsets = [0, 32], sizes = [16, 32], strides = [1, 1]} : vector<16x144xf32> to vector<16x32xf32>
    %39 = vector.shape_cast %38 : vector<16x32xf32> to vector<2x8x32xf32>
    %c0_23 = arith.constant 0 : index
    %c1 = arith.constant 1 : index
    %c0_24 = arith.constant 0 : index
    %c0_25 = arith.constant 0 : index
    %40 = vector.load %arg6[%c0_23, %c1, %c0_24, %c0_25] : memref<2x4x8x32xf32, #tpu.memory_space<vmem>>, vector<2x1x8x32xf32>
    %41 = vector.shape_cast %40 : vector<2x1x8x32xf32> to vector<2x8x32xf32>
    %42 = vector.shape_cast %39 : vector<2x8x32xf32> to vector<2x1x8x32xf32>
    tpu.vector_store %arg6[%c0_23, %c1, %c0_24, %c0_25], %42 {strides = array<i32>} : memref<2x4x8x32xf32, #tpu.memory_space<vmem>>, vector<2x1x8x32xf32>,
    %43 = vector.extract_strided_slice %32 {offsets = [0, 64], sizes = [16, 32], strides = [1, 1]} : vector<16x144xf32> to vector<16x32xf32>
    %44 = vector.shape_cast %43 : vector<16x32xf32> to vector<2x8x32xf32>
    %c0_26 = arith.constant 0 : index
    %c2 = arith.constant 2 : index
    %c0_27 = arith.constant 0 : index
    %c0_28 = arith.constant 0 : index
    %45 = vector.load %arg6[%c0_26, %c2, %c0_27, %c0_28] : memref<2x4x8x32xf32, #tpu.memory_space<vmem>>, vector<2x1x8x32xf32>
    %46 = vector.shape_cast %45 : vector<2x1x8x32xf32> to vector<2x8x32xf32>
    %47 = vector.shape_cast %44 : vector<2x8x32xf32> to vector<2x1x8x32xf32>
    tpu.vector_store %arg6[%c0_26, %c2, %c0_27, %c0_28], %47 {strides = array<i32>} : memref<2x4x8x32xf32, #tpu.memory_space<vmem>>, vector<2x1x8x32xf32>,
    %48 = vector.extract_strided_slice %32 {offsets = [0, 96], sizes = [16, 32], strides = [1, 1]} : vector<16x144xf32> to vector<16x32xf32>
    %49 = vector.shape_cast %48 : vector<16x32xf32> to vector<2x8x32xf32>
    %c0_29 = arith.constant 0 : index
    %c3 = arith.constant 3 : index
    %c0_30 = arith.constant 0 : index
    %c0_31 = arith.constant 0 : index
    %50 = vector.load %arg6[%c0_29, %c3, %c0_30, %c0_31] : memref<2x4x8x32xf32, #tpu.memory_space<vmem>>, vector<2x1x8x32xf32>
    %51 = vector.shape_cast %50 : vector<2x1x8x32xf32> to vector<2x8x32xf32>
    %52 = vector.shape_cast %49 : vector<2x8x32xf32> to vector<2x1x8x32xf32>
    tpu.vector_store %arg6[%c0_29, %c3, %c0_30, %c0_31], %52 {strides = array<i32>} : memref<2x4x8x32xf32, #tpu.memory_space<vmem>>, vector<2x1x8x32xf32>,
    return
  }
  func.func @transform_0(%arg0: i32) -> (i32, i32, i32) {
    %c0_i32 = arith.constant 0 : i32
    %c0_i32_0 = arith.constant 0 : i32
    %c0_i32_1 = arith.constant 0 : i32
    return %arg0, %c0_i32, %c0_i32_0 : i32, i32, i32
  }
  func.func @transform_1(%arg0: i32) -> (i32, i32) {
    %c0_i32 = arith.constant 0 : i32
    %c0_i32_0 = arith.constant 0 : i32
    %c0_i32_1 = arith.constant 0 : i32
    return %c0_i32, %c0_i32_0 : i32, i32
  }
  func.func @transform_2(%arg0: i32) -> (i32, i32) {
    %c0_i32 = arith.constant 0 : i32
    %c0_i32_0 = arith.constant 0 : i32
    %c0_i32_1 = arith.constant 0 : i32
    return %c0_i32, %c0_i32_0 : i32, i32
  }
  func.func @transform_3(%arg0: i32) -> (i32, i32) {
    %c0_i32 = arith.constant 0 : i32
    %c0_i32_0 = arith.constant 0 : i32
    %c0_i32_1 = arith.constant 0 : i32
    return %c0_i32, %c0_i32_0 : i32, i32
  }
  func.func @transform_4(%arg0: i32) -> (i32, i32) {
    %c0_i32 = arith.constant 0 : i32
    %c0_i32_0 = arith.constant 0 : i32
    %c0_i32_1 = arith.constant 0 : i32
    return %c0_i32, %c0_i32_0 : i32, i32
  }
  func.func @transform_5(%arg0: i32) -> (i32, i32, i32, i32) {
    %c0_i32 = arith.constant 0 : i32
    %c0_i32_0 = arith.constant 0 : i32
    %c0_i32_1 = arith.constant 0 : i32
    %c0_i32_2 = arith.constant 0 : i32
    return %arg0, %c0_i32, %c0_i32_0, %c0_i32_1 : i32, i32, i32, i32
  }
}

</mosaic_0001>

<llo_original>
// kernel: tpu_custom_call.1
$region0: #{tpu_custom_call.1}
  #allocation0 [shape = 'u32[]', space=smem, size = 0x4, offset = 0x4, fixed_abs, tag = 'smem constant byte address 0x4 - core index']
  #allocation1 [shape = 'u32[144,128]{1,0:T(1,128)}', space=vmem, size = 0x12000, scoped, tag = 'internal scratch']
  %s0 = inlined_call_operand.hbm [shape: f32[16,8,32], index: 0, kind: input, shape index: {}]
  %s1 = inlined_call_operand.vmem [shape: bf16[32,144], index: 1, kind: input, shape index: {}]
  %s2 = inlined_call_operand.vmem [shape: bf16[144,16], index: 2, kind: input, shape index: {}]
  %s3 = inlined_call_operand.vmem [shape: bf16[16,144], index: 3, kind: input, shape index: {}]
  %s4 = inlined_call_operand.vmem [shape: f32[1,144], index: 4, kind: input, shape index: {}]
  %s5 = inlined_call_operand.hbm [shape: f32[16,4,8,32], index: 5, kind: output, shape index: {}]
  %s6 = sld [smem:[#allocation0]]
  $region57: #{tpu_custom_call.1} parent=0
    _
  %s8 = ssub.s32 1, %s6
  %s9 = scalar_select 0, %s8, %s6
  $region1: #{tpu_custom_call.1} parent=0
    #allocation2 [shape = 'u8[16384]{0}', space=vmem, size = 0x4000, scoped, tag = 'input window, operand 0']
    #allocation3 [shape = 's32[2]{0}', space=sflag, size = 0x8, scoped, tag = 'scoped memory for tpu_custom_call.1']
    #allocation4 [shape = 's32[2]{0}', space=sflag, size = 0x8, scoped, tag = 'scoped memory for tpu_custom_call.1']
    #allocation5 [shape = 'u8[65536]{0}', space=vmem, size = 0x10000, scoped, tag = 'output window, operand 0']
    %10 = vsyncpa [#allocation3], 0
    %s11 = scalar_lea.sflag [#allocation3], 1
    %12 = vsyncpa %s11, 0
    %13 = vsyncpa [#allocation4], 0
    %s14 = scalar_lea.sflag [#allocation4], 1
    %15 = vsyncpa %s14, 0
    loop: start=0, step=1, limit=10
    $region2: #{tpu_custom_call.1} parent=1 // loop_pre_header
      _
    $region3: #{tpu_custom_call.1} parent=1 // loop_header
      %s17 = sphi 0, %s21
      %p18 = scmp.ge.s32.totalorder %s17, 10
      %s27 = sphi 0, %s29
      %s30 = sphi 0, %s27
      %s31 = sphi 0, %s30
      %s47 = sphi 0, %s31
      %s51 = sphi 0, %s51
      %s53 = sphi 0, %s51
      %s54 = sphi 0, %s53
      %s68 = sphi 0, %s54
      %s72 = sphi 0, %s72
      %s74 = sphi 0, %s72
      %s75 = sphi 0, %s74
      %s89 = sphi 0, %s75
      %s93 = sphi 0, %s93
      %s95 = sphi 0, %s93
      %s96 = sphi 0, %s95
      %s110 = sphi 0, %s96
      %s114 = sphi 0, %s114
      %s116 = sphi 0, %s114
      %s117 = sphi 0, %s116
      %s131 = sphi 0, %s117
      %s137 = sphi 0, %s139
      %s140 = sphi 0, %s137
      %s141 = sphi 0, %s140
      %s157 = sphi 0, %s141
    $region4: #{tpu_custom_call.1} parent=1 // loop_header_branch
      %20 = sbr.rel (%p18) target = $region8
    $region5: #{tpu_custom_call.1} parent=1 // loop_body
      %s22 = ssub.s32 %s17, 1
      %s23 = ssub.s32 %s17, 2
      %s24 = sadd.s32 %s17, 1
      %s25 = ssub.s32 %s17, %s24
      %p26 = scmp.eq.s32.totalorder %s25, 0
      %s28 = sadd.s32 %s27, 1
      %s29 = scalar_select %p26, %s27, %s28
      %p32 = pneg %p26
      %p33 = scmp.eq.s32.totalorder %s17, 7
      %p34 = por %p32, %p33
      %p35 = scmp.ne.s32.totalorder %s27, %s30
      %p36 = scmp.eq.s32.totalorder %s17, 0
      %p37 = por %p35, %p36
      %p38 = scmp.ne.s32.totalorder %s27, %s30
      %p39 = scmp.eq.s32.totalorder %s22, 7
      %p40 = por %p38, %p39
      %p41 = scmp.ne.s32.totalorder %s30, %s31
      %p42 = scmp.eq.s32.totalorder %s22, 0
      %p43 = por %p41, %p42
      %p44 = scmp.ne.s32.totalorder %s30, %s31
      %p45 = scmp.eq.s32.totalorder %s23, 7
      %p46 = por %p44, %p45
      %p48 = scmp.ne.s32.totalorder %s31, %s47
      %p49 = scmp.eq.s32.totalorder %s23, 0
      %p50 = por %p48, %p49
      %s52 = sadd.s32 %s51, 1
      %p55 = scmp.eq.s32.totalorder %s17, 7
      %p56 = scmp.ne.s32.totalorder %s51, %s53
      %p57 = scmp.eq.s32.totalorder %s17, 0
      %p58 = por %p56, %p57
      %p59 = scmp.ne.s32.totalorder %s51, %s53
      %p60 = scmp.eq.s32.totalorder %s22, 7
      %p61 = por %p59, %p60
      %p62 = scmp.ne.s32.totalorder %s53, %s54
      %p63 = scmp.eq.s32.totalorder %s22, 0
      %p64 = por %p62, %p63
      %p65 = scmp.ne.s32.totalorder %s53, %s54
      %p66 = scmp.eq.s32.totalorder %s23, 7
      %p67 = por %p65, %p66
      %p69 = scmp.ne.s32.totalorder %s54, %s68
      %p70 = scmp.eq.s32.totalorder %s23, 0
      %p71 = por %p69, %p70
      %s73 = sadd.s32 %s72, 1
      %p76 = scmp.eq.s32.totalorder %s17, 7
      %p77 = scmp.ne.s32.totalorder %s72, %s74
      %p78 = scmp.eq.s32.totalorder %s17, 0
      %p79 = por %p77, %p78
      %p80 = scmp.ne.s32.totalorder %s72, %s74
      %p81 = scmp.eq.s32.totalorder %s22, 7
      %p82 = por %p80, %p81
      %p83 = scmp.ne.s32.totalorder %s74, %s75
      %p84 = scmp.eq.s32.totalorder %s22, 0
      %p85 = por %p83, %p84
      %p86 = scmp.ne.s32.totalorder %s74, %s75
      %p87 = scmp.eq.s32.totalorder %s23, 7
      %p88 = por %p86, %p87
      %p90 = scmp.ne.s32.totalorder %s75, %s89
      %p91 = scmp.eq.s32.totalorder %s23, 0
      %p92 = por %p90, %p91
      %s94 = sadd.s32 %s93, 1
      %p97 = scmp.eq.s32.totalorder %s17, 7
      %p98 = scmp.ne.s32.totalorder %s93, %s95
      %p99 = scmp.eq.s32.totalorder %s17, 0
      %p100 = por %p98, %p99
      %p101 = scmp.ne.s32.totalorder %s93, %s95
      %p102 = scmp.eq.s32.totalorder %s22, 7
      %p103 = por %p101, %p102
      %p104 = scmp.ne.s32.totalorder %s95, %s96
      %p105 = scmp.eq.s32.totalorder %s22, 0
      %p106 = por %p104, %p105
      %p107 = scmp.ne.s32.totalorder %s95, %s96
      %p108 = scmp.eq.s32.totalorder %s23, 7
      %p109 = por %p107, %p108
      %p111 = scmp.ne.s32.totalorder %s96, %s110
      %p112 = scmp.eq.s32.totalorder %s23, 0
      %p113 = por %p111, %p112
      %s115 = sadd.s32 %s114, 1
      %p118 = scmp.eq.s32.totalorder %s17, 7
      %p119 = scmp.ne.s32.totalorder %s114, %s116
      %p120 = scmp.eq.s32.totalorder %s17, 0
      %p121 = por %p119, %p120
      %p122 = scmp.ne.s32.totalorder %s114, %s116
      %p123 = scmp.eq.s32.totalorder %s22, 7
      %p124 = por %p122, %p123
      %p125 = scmp.ne.s32.totalorder %s116, %s117
      %p126 = scmp.eq.s32.totalorder %s22, 0
      %p127 = por %p125, %p126
      %p128 = scmp.ne.s32.totalorder %s116, %s117
      %p129 = scmp.eq.s32.totalorder %s23, 7
      %p130 = por %p128, %p129
      %p132 = scmp.ne.s32.totalorder %s117, %s131
      %p133 = scmp.eq.s32.totalorder %s23, 0
      %p134 = por %p132, %p133
      %s135 = ssub.s32 %s17, %s24
      %p136 = scmp.eq.s32.totalorder %s135, 0
      %s138 = sadd.s32 %s137, 1
      %s139 = scalar_select %p136, %s137, %s138
      %p142 = pneg %p136
      %p143 = scmp.eq.s32.totalorder %s17, 7
      %p144 = por %p142, %p143
      %p145 = scmp.ne.s32.totalorder %s137, %s140
      %p146 = scmp.eq.s32.totalorder %s17, 0
      %p147 = por %p145, %p146
      %p148 = scmp.ne.s32.totalorder %s137, %s140
      %p149 = scmp.eq.s32.totalorder %s22, 7
      %p150 = por %p148, %p149
      %p151 = scmp.ne.s32.totalorder %s140, %s141
      %p152 = scmp.eq.s32.totalorder %s22, 0
      %p153 = por %p151, %p152
      %p154 = scmp.ne.s32.totalorder %s140, %s141
      %p155 = scmp.eq.s32.totalorder %s23, 7
      %p156 = por %p154, %p155
      %p158 = scmp.ne.s32.totalorder %s141, %s157
      %p159 = scmp.eq.s32.totalorder %s23, 0
      %p160 = por %p158, %p159
      %p161 = scmp.le.s32.totalorder 1, %s17
      %p162 = scmp.lt.s32.totalorder %s17, 9
      %p163 = pnand %p161, %p162
      %p164 = pneg %p163
      // Predicated region
      $region9: #{tpu_custom_call.1} parent=5 // pred_check
        _
      $region10: #{tpu_custom_call.1} parent=5 // pred_check_branch
        %166 = sbr.rel (%p163) target = $region12
      $region11: #{tpu_custom_call.1} parent=5 // pred_region
        %s167 = ssub.s32 %s17, 1
        // Predicated region
        $region13: #{tpu_custom_call.1} parent=11 // pred_check
          %p168 = pneg %p64
        $region14: #{tpu_custom_call.1} parent=11 // pred_check_branch
          %170 = sbr.rel (%p168) target = $region16
        $region15: #{tpu_custom_call.1} parent=11 // pred_region
          _
        $region16: #{tpu_custom_call.1} parent=11 // pred_fallthru
          _
        // Predicated region
        $region17: #{tpu_custom_call.1} parent=11 // pred_check
          %p171 = pneg %p85
        $region18: #{tpu_custom_call.1} parent=11 // pred_check_branch
          %173 = sbr.rel (%p171) target = $region20
        $region19: #{tpu_custom_call.1} parent=11 // pred_region
          _
        $region20: #{tpu_custom_call.1} parent=11 // pred_fallthru
          _
        // Predicated region
        $region21: #{tpu_custom_call.1} parent=11 // pred_check
          %p174 = pneg %p106
        $region22: #{tpu_custom_call.1} parent=11 // pred_check_branch
          %176 = sbr.rel (%p174) target = $region24
        $region23: #{tpu_custom_call.1} parent=11 // pred_region
          _
        $region24: #{tpu_custom_call.1} parent=11 // pred_fallthru
          _
        // Predicated region
        $region25: #{tpu_custom_call.1} parent=11 // pred_check
          %p177 = pneg %p127
        $region26: #{tpu_custom_call.1} parent=11 // pred_check_branch
          %179 = sbr.rel (%p177) target = $region28
        $region27: #{tpu_custom_call.1} parent=11 // pred_region
          _
        $region28: #{tpu_custom_call.1} parent=11 // pred_fallthru
          _
      $region12: #{tpu_custom_call.1} parent=5 // pred_fallthru
        _
      %p180 = scmp.lt.s32.totalorder %s17, 8
      // Predicated region
      $region29: #{tpu_custom_call.1} parent=5 // pred_check
        %p181 = pneg %p180
      $region30: #{tpu_custom_call.1} parent=5 // pred_check_branch
        %183 = sbr.rel (%p181) target = $region32
      $region31: #{tpu_custom_call.1} parent=5 // pred_region
        // Predicated region
        $region33: #{tpu_custom_call.1} parent=31 // pred_check
          %p184 = pneg %p37
        $region34: #{tpu_custom_call.1} parent=31 // pred_check_branch
          %186 = sbr.rel (%p184) target = $region36
        $region35: #{tpu_custom_call.1} parent=31 // pred_region
          %s187 = sand.u32 %s27, 1
          %s188 = scalar_lea.sflag [#allocation3], %s187
          %s189 = sand.u32 %s27, 1
          %s190 = smul.addr %s189, 16
          %s191 = scalar_lea.vmem [#allocation2], %s190
          %s192 = smul.u32 2, %s17
          %s194 = ssub.s32 256, 256
          %195 = vsyncadd %s188, %s194
          %s196 = smul.addr %s192, 128
          %s197 = scalar_lea.hbm %s0, %s196
          %s198 = sshll.u32 %s191, 4
          %s199 = int_to_ptr.vmem [resolvable:$true] %s198
          %204 = dma.hbm_to_vmem [thread:$0]  %s197, 256, %s199, %s188, 128, 128, 8
        $region36: #{tpu_custom_call.1} parent=31 // pred_fallthru
          _
      $region32: #{tpu_custom_call.1} parent=5 // pred_fallthru
        _
      %p205 = scmp.le.s32.totalorder 1, %s17
      %p206 = scmp.lt.s32.totalorder %s17, 9
      %p207 = pnand %p205, %p206
      %p208 = pneg %p207
      // Predicated region
      $region37: #{tpu_custom_call.1} parent=5 // pred_check
        _
      $region38: #{tpu_custom_call.1} parent=5 // pred_check_branch
        %210 = sbr.rel (%p207) target = $region40
      $region39: #{tpu_custom_call.1} parent=5 // pred_region
        %s211 = ssub.s32 %s17, 1
        %s212 = sand.u32 %s30, 1
        %s213 = scalar_lea.sflag [#allocation3], %s212
        %s214 = sand.u32 %s30, 1
        %s215 = smul.addr %s214, 16
        %s216 = scalar_lea.vmem [#allocation2], %s215
        // Predicated region
        $region41: #{tpu_custom_call.1} parent=39 // pred_check
          %p217 = pneg %p43
        $region42: #{tpu_custom_call.1} parent=39 // pred_check_branch
          %219 = sbr.rel (%p217) target = $region44
        $region43: #{tpu_custom_call.1} parent=39 // pred_region
          %220 = dma.done %s213, 256
        $region44: #{tpu_custom_call.1} parent=39 // pred_fallthru
          _
        %s221 = sand.u32 %s30, 1
        %s222 = scalar_lea.sflag [#allocation3], %s221
        %s223 = sand.u32 %s30, 1
        %s224 = smul.addr %s223, 16
        %s225 = scalar_lea.vmem [#allocation2], %s224
        %p226 = pneg %p43
        %p227 = pneg %p40
        %p228 = pneg %p64
        %p229 = pneg %p61
        %p230 = pneg %p85
        %p231 = pneg %p82
        %p232 = pneg %p106
        %p233 = pneg %p103
        %p234 = pneg %p127
        %p235 = pneg %p124
        %p236 = pneg %p153
        %p237 = pneg %p150
        %s238 = sand.u32 %s140, 1
        %s239 = scalar_lea.sflag [#allocation4], %s238
        %s240 = sand.u32 %s140, 1
        %s241 = smul.addr %s240, 64
        %s242 = scalar_lea.vmem [#allocation5], %s241
        %s243 = smul.u32 2, %s22
        %s244 = smul.u32 2, %s22
        %v246 = vld [vmem:[%s216] sm:$0xff]
        %v247 = vld [vmem:[%s216 + $0x8] sm:$0xff]
        %v248 = vpack.c.bf16 %v247, %v246
        %v249 = vld [vmem:[%s1] sm:$0xff]
        %v250 = vld [vmem:[%s1 + $0x8] sm:$0xff]
        %v251 = vld [vmem:[%s1 + $0x10] sm:$0xff]
        %v252 = vld [vmem:[%s1 + $0x18] sm:$0xff]
        %v257 = vunpack.c.l.b16 %v249
        %v258 = vunpack.c.h.b16 %v249
        %v259 = vunpack.c.l.b16 %v250
        %v260 = vunpack.c.h.b16 %v250
        %v261 = vunpack.c.l.b16 %v251
        %v262 = vunpack.c.h.b16 %v251
        %v263 = vunpack.c.l.b16 %v252
        %v264 = vunpack.c.h.b16 %v252
        %v265 = vpack.c.b16 %v259, %v257
        %v266 = vpack.c.b16 %v260, %v258
        %v267 = vpack.c.b16 %v263, %v261
        %v268 = vpack.c.b16 %v264, %v262
        %vm273 = vcmask 261120
        %v275 = vsel %vm273, %v248, 0
        %277 = vmatprep.subr.bf16.mxu0 %v266
        %278 = vmatpush1.bf16.msra.mxu0 %v265
        %279 = vmatprep.subr.bf16.mxu0 %v268
        %280 = vmatpush1.bf16.msra.mxu0 %v267
        %281 = vmatprep.subr.bf16.mxu0 0
        %282 = vmatpush1.bf16.msra.mxu0 0
        %283 = vmatprep.subr.bf16.mxu0 0
        %284 = vmatpush1.bf16.msra.mxu0 0
        %285 = vmatprep.subr.bf16.mxu0 0
        %286 = vmatpush1.bf16.msra.mxu0 0
        %287 = vmatprep.subr.bf16.mxu0 0
        %288 = vmatpush1.bf16.msra.mxu0 0
        %289 = vmatprep.subr.bf16.mxu0 0
        %290 = vmatpush1.bf16.msra.mxu0 0
        %291 = vmatprep.subr.bf16.mxu0 0
        %292 = vmatpush1.bf16.msra.mxu0 0
        %293 = vmatprep.subr.bf16.mxu0 0
        %294 = vmatpush1.bf16.msra.mxu0 0
        %295 = vmatprep.subr.bf16.mxu0 0
        %296 = vmatpush1.bf16.msra.mxu0 0
        %297 = vmatprep.subr.bf16.mxu0 0
        %298 = vmatpush1.bf16.msra.mxu0 0
        %299 = vmatprep.subr.bf16.mxu0 0
        %300 = vmatpush1.bf16.msra.mxu0 0
        %301 = vmatprep.subr.bf16.mxu0 0
        %302 = vmatpush1.bf16.msra.mxu0 0
        %303 = vmatprep.subr.bf16.mxu0 0
        %304 = vmatpush1.bf16.msra.mxu0 0
        %305 = vmatprep.subr.bf16.mxu0 0
        %306 = vmatpush1.bf16.msra.mxu0 0
        %307 = vmatprep.subr.bf16.mxu0 0
        %308 = vmatpush1.bf16.msra.mxu0 0
        %309 = vmatprep.mubr.bf16.mxu0 0
        %310 = vmatmul.mubr.bf16.gmra.mrb[0].mxu0 %v275
        %v311 = vpop.f32.mrb[0].mxu0
        %v312 = vadd.f32 0.0, %v311
        %v313 = vpop.f32.mrb[0].mxu0
        %v314 = vadd.f32 0.0, %v313
        %v315 = vpop.f32.mrb[0].mxu0
        %v316 = vadd.f32 0.0, %v315
        %v317 = vpop.f32.mrb[0].mxu0
        %v318 = vadd.f32 0.0, %v317
        %319 = vdwg.mxu0
        %v320 = vmul.f32 %v314, 0.125
        %v321 = vmul.f32 %v318, 0.125
        %v322 = vmul.f32 %v312, %v312
        %v323 = vmul.f32 %v314, %v314
        %v324 = vmul.f32 %v316, %v316
        %v325 = vmul.f32 %v318, %v318
        %v326 = vpack.c.bf16 %v324, %v322
        %v327 = vpack.c.bf16 %v325, %v323
        %v328 = vld [vmem:[%s2] sm:$0xf]
        %v329 = vld [vmem:[%s2 + $0x4] sm:$0xf]
        %v330 = vld [vmem:[%s2 + $0x8] sm:$0xf]
        %v331 = vld [vmem:[%s2 + $0xc] sm:$0xf]
        %v332 = vld [vmem:[%s2 + $0x10] sm:$0xf]
        %v333 = vld [vmem:[%s2 + $0x14] sm:$0xf]
        %v334 = vld [vmem:[%s2 + $0x18] sm:$0xf]
        %v335 = vld [vmem:[%s2 + $0x1c] sm:$0xf]
        %v336 = vld [vmem:[%s2 + $0x20] sm:$0xf]
        %v337 = vld [vmem:[%s2 + $0x24] sm:$0xf]
        %v338 = vld [vmem:[%s2 + $0x28] sm:$0xf]
        %v339 = vld [vmem:[%s2 + $0x2c] sm:$0xf]
        %v340 = vld [vmem:[%s2 + $0x30] sm:$0xf]
        %v341 = vld [vmem:[%s2 + $0x34] sm:$0xf]
        %v342 = vld [vmem:[%s2 + $0x38] sm:$0xf]
        %v343 = vld [vmem:[%s2 + $0x3c] sm:$0xf]
        %v344 = vld [vmem:[%s2 + $0x40] sm:$0xf]
        %v345 = vld [vmem:[%s2 + $0x44] sm:$0xf]
        %v364 = vunpack.c.l.b16 %v328
        %v365 = vunpack.c.l.b16 %v329
        %v366 = vunpack.c.l.b16 %v330
        %v367 = vunpack.c.l.b16 %v331
        %v368 = vunpack.c.l.b16 %v332
        %v369 = vunpack.c.l.b16 %v333
        %v370 = vunpack.c.l.b16 %v334
        %v371 = vunpack.c.l.b16 %v335
        %v372 = vunpack.c.l.b16 %v336
        %v373 = vunpack.c.l.b16 %v337
        %v374 = vunpack.c.l.b16 %v338
        %v375 = vunpack.c.l.b16 %v339
        %v376 = vunpack.c.l.b16 %v340
        %v377 = vunpack.c.l.b16 %v341
        %v378 = vunpack.c.l.b16 %v342
        %v379 = vunpack.c.l.b16 %v343
        %v380 = vunpack.c.l.b16 %v344
        %v381 = vunpack.c.l.b16 %v345
        %v382 = vpack.c.b16 %v365, %v364
        %v383 = vpack.c.b16 %v367, %v366
        %v384 = vpack.c.b16 %v369, %v368
        %v385 = vpack.c.b16 %v371, %v370
        %v386 = vpack.c.b16 %v373, %v372
        %v387 = vpack.c.b16 %v375, %v374
        %v388 = vpack.c.b16 %v377, %v376
        %v389 = vpack.c.b16 %v379, %v378
        %v390 = vpack.c.b16 %v381, %v380
        %vm400 = vcmask 130048
        %v402 = vsel %vm400, %v327, 0
        %404 = vmatprep.subr.bf16.mxu0 0
        %405 = vmatpush1.bf16.msra.mxu0 %v382
        %406 = vmatprep.subr.bf16.mxu0 0
        %407 = vmatpush1.bf16.msra.mxu0 %v383
        %408 = vmatprep.subr.bf16.mxu0 0
        %409 = vmatpush1.bf16.msra.mxu0 %v384
        %410 = vmatprep.subr.bf16.mxu0 0
        %411 = vmatpush1.bf16.msra.mxu0 %v385
        %412 = vmatprep.subr.bf16.mxu0 0
        %413 = vmatpush1.bf16.msra.mxu0 %v386
        %414 = vmatprep.subr.bf16.mxu0 0
        %415 = vmatpush1.bf16.msra.mxu0 %v387
        %416 = vmatprep.subr.bf16.mxu0 0
        %417 = vmatpush1.bf16.msra.mxu0 %v388
        %418 = vmatprep.subr.bf16.mxu0 0
        %419 = vmatpush1.bf16.msra.mxu0 %v389
        %420 = vmatprep.subr.bf16.mxu0 0
        %421 = vmatpush1.bf16.msra.mxu0 %v390
        %422 = vmatprep.subr.bf16.mxu0 0
        %423 = vmatpush1.bf16.msra.mxu0 0
        %424 = vmatprep.subr.bf16.mxu0 0
        %425 = vmatpush1.bf16.msra.mxu0 0
        %426 = vmatprep.subr.bf16.mxu0 0
        %427 = vmatpush1.bf16.msra.mxu0 0
        %428 = vmatprep.subr.bf16.mxu0 0
        %429 = vmatpush1.bf16.msra.mxu0 0
        %430 = vmatprep.subr.bf16.mxu0 0
        %431 = vmatpush1.bf16.msra.mxu0 0
        %432 = vmatprep.subr.bf16.mxu0 0
        %433 = vmatpush1.bf16.msra.mxu0 0
        %434 = vmatprep.subr.bf16.mxu0 0
        %435 = vmatpush1.bf16.msra.mxu0 0
        %436 = vmatprep.mubr.bf16.mxu0 %v402
        %437 = vmatmul.mubr.bf16.gmra.mrb[0].mxu0 %v326
        %v438 = vpop.f32.mrb[0].mxu0
        %v439 = vadd.f32 0.0, %v438
        %v440 = vpop.f32.mrb[0].mxu0
        %v441 = vpop.f32.mrb[0].mxu0
        %v442 = vadd.f32 0.0, %v441
        %v443 = vpop.f32.mrb[0].mxu0
        %444 = vdwg.mxu0
        %v445 = vmul.f32 %v439, 0.125
        %v446 = vmul.f32 %v442, 0.125
        %v447 = vmul.f32 %v320, %v320
        %v448 = vmul.f32 %v321, %v321
        %v449 = vsub.f32 %v445, %v447
        %v450 = vsub.f32 %v446, %v448
        %v451 = vmax.f32 %v449, 0.0
        %v452 = vmax.f32 %v450, 0.0
        %v453 = vadd.f32 %v451, 1e-05
        %v454 = vadd.f32 %v452, 1e-05
        %v455 = vrsqrt.pop %v453
        %v456 = vrsqrt.pop %v454
        %v457 = vpack.c.bf16 %v456, %v455
        %v458 = vld [vmem:[%s3] sm:$0xff]
        %v459 = vld [vmem:[%s3 + $0x8] sm:$0xff]
        %v462 = vunpack.c.l.b16 %v458
        %v463 = vunpack.c.h.b16 %v458
        %v464 = vunpack.c.l.b16 %v459
        %v465 = vunpack.c.h.b16 %v459
        %v466 = vpack.c.b16 %v464, %v462
        %v467 = vpack.c.b16 %v465, %v463
        %v471 = vsel %vm400, %v457, 0
        %473 = vmatprep.subr.bf16.mxu0 %v467
        %474 = vmatpush1.bf16.msra.mxu0 %v466
        %475 = vmatprep.subr.bf16.mxu0 0
        %476 = vmatpush1.bf16.msra.mxu0 0
        %477 = vmatprep.subr.bf16.mxu0 0
        %478 = vmatpush1.bf16.msra.mxu0 0
        %479 = vmatprep.subr.bf16.mxu0 0
        %480 = vmatpush1.bf16.msra.mxu0 0
        %481 = vmatprep.subr.bf16.mxu0 0
        %482 = vmatpush1.bf16.msra.mxu0 0
        %483 = vmatprep.subr.bf16.mxu0 0
        %484 = vmatpush1.bf16.msra.mxu0 0
        %485 = vmatprep.subr.bf16.mxu0 0
        %486 = vmatpush1.bf16.msra.mxu0 0
        %487 = vmatprep.subr.bf16.mxu0 0
        %488 = vmatpush1.bf16.msra.mxu0 0
        %489 = vmatprep.subr.bf16.mxu0 0
        %490 = vmatpush1.bf16.msra.mxu0 0
        %491 = vmatprep.subr.bf16.mxu0 0
        %492 = vmatpush1.bf16.msra.mxu0 0
        %493 = vmatprep.subr.bf16.mxu0 0
        %494 = vmatpush1.bf16.msra.mxu0 0
        %495 = vmatprep.subr.bf16.mxu0 0
        %496 = vmatpush1.bf16.msra.mxu0 0
        %497 = vmatprep.subr.bf16.mxu0 0
        %498 = vmatpush1.bf16.msra.mxu0 0
        %499 = vmatprep.subr.bf16.mxu0 0
        %500 = vmatpush1.bf16.msra.mxu0 0
        %501 = vmatprep.subr.bf16.mxu0 0
        %502 = vmatpush1.bf16.msra.mxu0 0
        %503 = vmatprep.subr.bf16.mxu0 0
        %504 = vmatpush1.bf16.msra.mxu0 0
        %505 = vmatprep.mubr.bf16.mxu0 0
        %506 = vmatmul.mubr.bf16.gmra.mrb[0].mxu0 %v471
        %v507 = vpop.f32.mrb[0].mxu0
        %v508 = vadd.f32 0.0, %v507
        %v509 = vpop.f32.mrb[0].mxu0
        %v510 = vpop.f32.mrb[0].mxu0
        %v511 = vadd.f32 0.0, %v510
        %v512 = vpop.f32.mrb[0].mxu0
        %513 = vdwg.mxu0
        %v514 = vmul.f32 %v320, %v455
        %v515 = vmul.f32 %v321, %v456
        %v516 = vpack.c.bf16 %v515, %v514
        %v518 = vsel %vm400, %v516, 0
        %520 = vmatprep.subr.bf16.mxu0 %v467
        %521 = vmatpush1.bf16.msra.mxu0 %v466
        %522 = vmatprep.subr.bf16.mxu0 0
        %523 = vmatpush1.bf16.msra.mxu0 0
        %524 = vmatprep.subr.bf16.mxu0 0
        %525 = vmatpush1.bf16.msra.mxu0 0
        %526 = vmatprep.subr.bf16.mxu0 0
        %527 = vmatpush1.bf16.msra.mxu0 0
        %528 = vmatprep.subr.bf16.mxu0 0
        %529 = vmatpush1.bf16.msra.mxu0 0
        %530 = vmatprep.subr.bf16.mxu0 0
        %531 = vmatpush1.bf16.msra.mxu0 0
        %532 = vmatprep.subr.bf16.mxu0 0
        %533 = vmatpush1.bf16.msra.mxu0 0
        %534 = vmatprep.subr.bf16.mxu0 0
        %535 = vmatpush1.bf16.msra.mxu0 0
        %536 = vmatprep.subr.bf16.mxu0 0
        %537 = vmatpush1.bf16.msra.mxu0 0
        %538 = vmatprep.subr.bf16.mxu0 0
        %539 = vmatpush1.bf16.msra.mxu0 0
        %540 = vmatprep.subr.bf16.mxu0 0
        %541 = vmatpush1.bf16.msra.mxu0 0
        %542 = vmatprep.subr.bf16.mxu0 0
        %543 = vmatpush1.bf16.msra.mxu0 0
        %544 = vmatprep.subr.bf16.mxu0 0
        %545 = vmatpush1.bf16.msra.mxu0 0
        %546 = vmatprep.subr.bf16.mxu0 0
        %547 = vmatpush1.bf16.msra.mxu0 0
        %548 = vmatprep.subr.bf16.mxu0 0
        %549 = vmatpush1.bf16.msra.mxu0 0
        %550 = vmatprep.subr.bf16.mxu0 0
        %551 = vmatpush1.bf16.msra.mxu0 0
        %552 = vmatprep.mubr.bf16.mxu0 0
        %553 = vmatmul.mubr.bf16.gmra.mrb[0].mxu0 %v518
        %v554 = vpop.f32.mrb[0].mxu0
        %v555 = vadd.f32 0.0, %v554
        %v556 = vpop.f32.mrb[0].mxu0
        %v557 = vpop.f32.mrb[0].mxu0
        %v558 = vadd.f32 0.0, %v557
        %v559 = vpop.f32.mrb[0].mxu0
        %560 = vdwg.mxu0
        %v561 = vmul.f32 %v312, %v508
        %v562 = vmul.f32 %v316, %v511
        %v563 = vld [vmem:[%s4] sm:$0x3]
        %v565 = vlaneseq
        %v566 = vshrl.u32 %v565, 7
        %v567 = vsub.s32 0, %v566
        %v568 = vrot.slane %v563, %v567
        %v570 = vsub.f32 %v568, %v555
        %v571 = vsub.f32 %v568, %v558
        %v572 = vadd.f32 %v561, %v570
        %v573 = vadd.f32 %v562, %v571
        %574 = vst.msk [vmem:[%s242] sm:$0xff] %vm273, %v572
        %575 = vst.msk [vmem:[%s242 + $0x20] sm:$0xff] %vm273, %v573
        %578 = vrot.lane.b32.xlu0 %v572, 96
        %v579 = vpop.permute.xlu0 %578
        %580 = vrot.lane.b32.xlu0 %v573, 96
        %v581 = vpop.permute.xlu0 %580
        %s584 = scalar_lea.vmem %s242, 8 [#allocation5]
        %585 = vst.msk [vmem:[%s584] sm:$0xff] %vm273, %v579
        %586 = vst.msk [vmem:[%s584 + $0x20] sm:$0xff] %vm273, %v581
        %587 = vrot.lane.b32.xlu0 %v572, 64
        %v588 = vpop.permute.xlu0 %587
        %589 = vrot.lane.b32.xlu0 %v573, 64
        %v590 = vpop.permute.xlu0 %589
        %s593 = scalar_lea.vmem %s242, 16 [#allocation5]
        %594 = vst.msk [vmem:[%s593] sm:$0xff] %vm273, %v588
        %595 = vst.msk [vmem:[%s593 + $0x20] sm:$0xff] %vm273, %v590
        %596 = vrot.lane.b32.xlu0 %v572, 32
        %v597 = vpop.permute.xlu0 %596
        %598 = vrot.lane.b32.xlu0 %v573, 32
        %v599 = vpop.permute.xlu0 %598
        %s602 = scalar_lea.vmem %s242, 24 [#allocation5]
        %603 = vst.msk [vmem:[%s602] sm:$0xff] %vm273, %v597
        %604 = vst.msk [vmem:[%s602 + $0x20] sm:$0xff] %vm273, %v599
        %s605 = sand.u32 %s140, 1
        %s606 = scalar_lea.sflag [#allocation4], %s605
        %s607 = sand.u32 %s140, 1
        %s608 = smul.addr %s607, 64
        %s609 = scalar_lea.vmem [#allocation5], %s608
        // Predicated region
        $region45: #{tpu_custom_call.1} parent=39 // pred_check
          %p610 = pneg %p150
        $region46: #{tpu_custom_call.1} parent=39 // pred_check_branch
          %612 = sbr.rel (%p610) target = $region48
        $region47: #{tpu_custom_call.1} parent=39 // pred_region
          %s613 = smul.u32 2, %s22
          %s615 = ssub.s32 1024, 1024
          %616 = vsyncadd %s606, %s615
          %s617 = smul.addr %s613, 4
          %s618 = smul.addr %s617, 128
          %s619 = scalar_lea.hbm %s5, %s618
          %s620 = sshll.u32 %s609, 4
          %s621 = int_to_ptr.vmem [resolvable:$true] %s620
          %626 = dma.vmem_to_hbm [thread:$0]  %s621, 1024, %s619, %s606, 128, 128, 8
        $region48: #{tpu_custom_call.1} parent=39 // pred_fallthru
          _
      $region40: #{tpu_custom_call.1} parent=5 // pred_fallthru
        _
      %p627 = scmp.le.s32.totalorder 2, %s17
      // Predicated region
      $region49: #{tpu_custom_call.1} parent=5 // pred_check
        %p628 = pneg %p627
      $region50: #{tpu_custom_call.1} parent=5 // pred_check_branch
        %630 = sbr.rel (%p628) target = $region52
      $region51: #{tpu_custom_call.1} parent=5 // pred_region
        %s631 = ssub.s32 %s17, 2
        // Predicated region
        $region53: #{tpu_custom_call.1} parent=51 // pred_check
          %p632 = pneg %p156
        $region54: #{tpu_custom_call.1} parent=51 // pred_check_branch
          %634 = sbr.rel (%p632) target = $region56
        $region55: #{tpu_custom_call.1} parent=51 // pred_region
          %s635 = sand.u32 %s141, 1
          %s636 = scalar_lea.sflag [#allocation4], %s635
          %s637 = sand.u32 %s141, 1
          %s638 = smul.addr %s637, 64
          %s639 = scalar_lea.vmem [#allocation5], %s638
          %640 = dma.done %s636, 1024
        $region56: #{tpu_custom_call.1} parent=51 // pred_fallthru
          _
      $region52: #{tpu_custom_call.1} parent=5 // pred_fallthru
        _
    $region6: #{tpu_custom_call.1} parent=1 // loop_footer
      %s21 = sadd.s32 1, %s17
    $region7: #{tpu_custom_call.1} parent=1 // loop_footer_branch
      %16 = sbr.rel target = $region3
    $region8: #{tpu_custom_call.1} parent=1 // loop_exit
      _
    %641 = vsyncpa [#allocation3], 1
    %s642 = scalar_lea.sflag [#allocation3], 1
    %643 = vsyncpa %s642, 1
    %644 = vsyncpa [#allocation4], 1
    %s645 = scalar_lea.sflag [#allocation4], 1
    %646 = vsyncpa %s645, 1

// kernel: tpu_custom_call.1
$region0: #{tpu_custom_call.1}
  #allocation0 [shape = 'u32[]', space=smem, size = 0x4, offset = 0x4, fixed_abs, tag = 'smem constant byte address 0x4 - core index']
  #allocation1 [shape = 'u32[144,128]{1,0:T(1,128)}', space=vmem, size = 0x12000, scoped, tag = 'internal scratch']
  %s0 = inlined_call_operand.hbm [shape: f32[16,8,32], index: 0, kind: input, shape index: {}]
  %s1 = inlined_call_operand.vmem [shape: bf16[32,144], index: 1, kind: input, shape index: {}]
  %s2 = inlined_call_operand.vmem [shape: bf16[144,16], index: 2, kind: input, shape index: {}]
  %s3 = inlined_call_operand.vmem [shape: bf16[16,144], index: 3, kind: input, shape index: {}]
  %s4 = inlined_call_operand.vmem [shape: f32[1,144], index: 4, kind: input, shape index: {}]
  %s5 = inlined_call_operand.hbm [shape: f32[16,4,8,32], index: 5, kind: output, shape index: {}]
  %s6 = sld [smem:[#allocation0]]
  $region57: #{tpu_custom_call.1} parent=0
    _
  %s8 = ssub.s32 1, %s6
  %s9 = scalar_select 0, %s8, %s6
  $region1: #{tpu_custom_call.1} parent=0
    #allocation2 [shape = 'u8[16384]{0}', space=vmem, size = 0x4000, scoped, tag = 'input window, operand 0']
    #allocation3 [shape = 's32[2]{0}', space=sflag, size = 0x8, scoped, tag = 'scoped memory for tpu_custom_call.1']
    #allocation4 [shape = 's32[2]{0}', space=sflag, size = 0x8, scoped, tag = 'scoped memory for tpu_custom_call.1']
    #allocation5 [shape = 'u8[65536]{0}', space=vmem, size = 0x10000, scoped, tag = 'output window, operand 0']
    %10 = vsyncpa [#allocation3], 0
    %s11 = scalar_lea.sflag [#allocation3], 1
    %12 = vsyncpa %s11, 0
    %13 = vsyncpa [#allocation4], 0
    %s14 = scalar_lea.sflag [#allocation4], 1
    %15 = vsyncpa %s14, 0
    loop: start=0, step=1, limit=10
    $region2: #{tpu_custom_call.1} parent=1 // loop_pre_header
      _
    $region3: #{tpu_custom_call.1} parent=1 // loop_header
      %s17 = sphi 0, %s21
      %p18 = scmp.ge.s32.totalorder %s17, 10
      %s27 = sphi 0, %s29
      %s30 = sphi 0, %s27
      %s31 = sphi 0, %s30
      %s47 = sphi 0, %s31
      %s51 = sphi 0, %s51
      %s53 = sphi 0, %s51
      %s54 = sphi 0, %s53
      %s68 = sphi 0, %s54
      %s72 = sphi 0, %s72
      %s74 = sphi 0, %s72
      %s75 = sphi 0, %s74
      %s89 = sphi 0, %s75
      %s93 = sphi 0, %s93
      %s95 = sphi 0, %s93
      %s96 = sphi 0, %s95
      %s110 = sphi 0, %s96
      %s114 = sphi 0, %s114
      %s116 = sphi 0, %s114
      %s117 = sphi 0, %s116
      %s131 = sphi 0, %s117
      %s137 = sphi 0, %s139
      %s140 = sphi 0, %s137
      %s141 = sphi 0, %s140
      %s157 = sphi 0, %s141
    $region4: #{tpu_custom_call.1} parent=1 // loop_header_branch
      %20 = sbr.rel (%p18) target = $region8
    $region5: #{tpu_custom_call.1} parent=1 // loop_body
      %s22 = ssub.s32 %s17, 1
      %s23 = ssub.s32 %s17, 2
      %s24 = sadd.s32 %s17, 1
      %s25 = ssub.s32 %s17, %s24
      %p26 = scmp.eq.s32.totalorder %s25, 0
      %s28 = sadd.s32 %s27, 1
      %s29 = scalar_select %p26, %s27, %s28
      %p32 = pneg %p26
      %p33 = scmp.eq.s32.totalorder %s17, 7
      %p34 = por %p32, %p33
      %p35 = scmp.ne.s32.totalorder %s27, %s30
      %p36 = scmp.eq.s32.totalorder %s17, 0
      %p37 = por %p35, %p36
      %p38 = scmp.ne.s32.totalorder %s27, %s30
      %p39 = scmp.eq.s32.totalorder %s22, 7
      %p40 = por %p38, %p39
      %p41 = scmp.ne.s32.totalorder %s30, %s31
      %p42 = scmp.eq.s32.totalorder %s22, 0
      %p43 = por %p41, %p42
      %p44 = scmp.ne.s32.totalorder %s30, %s31
      %p45 = scmp.eq.s32.totalorder %s23, 7
      %p46 = por %p44, %p45
      %p48 = scmp.ne.s32.totalorder %s31, %s47
      %p49 = scmp.eq.s32.totalorder %s23, 0
      %p50 = por %p48, %p49
      %s52 = sadd.s32 %s51, 1
      %p55 = scmp.eq.s32.totalorder %s17, 7
      %p56 = scmp.ne.s32.totalorder %s51, %s53
      %p57 = scmp.eq.s32.totalorder %s17, 0
      %p58 = por %p56, %p57
      %p59 = scmp.ne.s32.totalorder %s51, %s53
      %p60 = scmp.eq.s32.totalorder %s22, 7
      %p61 = por %p59, %p60
      %p62 = scmp.ne.s32.totalorder %s53, %s54
      %p63 = scmp.eq.s32.totalorder %s22, 0
      %p64 = por %p62, %p63
      %p65 = scmp.ne.s32.totalorder %s53, %s54
      %p66 = scmp.eq.s32.totalorder %s23, 7
      %p67 = por %p65, %p66
      %p69 = scmp.ne.s32.totalorder %s54, %s68
      %p70 = scmp.eq.s32.totalorder %s23, 0
      %p71 = por %p69, %p70
      %s73 = sadd.s32 %s72, 1
      %p76 = scmp.eq.s32.totalorder %s17, 7
      %p77 = scmp.ne.s32.totalorder %s72, %s74
      %p78 = scmp.eq.s32.totalorder %s17, 0
      %p79 = por %p77, %p78
      %p80 = scmp.ne.s32.totalorder %s72, %s74
      %p81 = scmp.eq.s32.totalorder %s22, 7
      %p82 = por %p80, %p81
      %p83 = scmp.ne.s32.totalorder %s74, %s75
      %p84 = scmp.eq.s32.totalorder %s22, 0
      %p85 = por %p83, %p84
      %p86 = scmp.ne.s32.totalorder %s74, %s75
      %p87 = scmp.eq.s32.totalorder %s23, 7
      %p88 = por %p86, %p87
      %p90 = scmp.ne.s32.totalorder %s75, %s89
      %p91 = scmp.eq.s32.totalorder %s23, 0
      %p92 = por %p90, %p91
      %s94 = sadd.s32 %s93, 1
      %p97 = scmp.eq.s32.totalorder %s17, 7
      %p98 = scmp.ne.s32.totalorder %s93, %s95
      %p99 = scmp.eq.s32.totalorder %s17, 0
      %p100 = por %p98, %p99
      %p101 = scmp.ne.s32.totalorder %s93, %s95
      %p102 = scmp.eq.s32.totalorder %s22, 7
      %p103 = por %p101, %p102
      %p104 = scmp.ne.s32.totalorder %s95, %s96
      %p105 = scmp.eq.s32.totalorder %s22, 0
      %p106 = por %p104, %p105
      %p107 = scmp.ne.s32.totalorder %s95, %s96
      %p108 = scmp.eq.s32.totalorder %s23, 7
      %p109 = por %p107, %p108
      %p111 = scmp.ne.s32.totalorder %s96, %s110
      %p112 = scmp.eq.s32.totalorder %s23, 0
      %p113 = por %p111, %p112
      %s115 = sadd.s32 %s114, 1
      %p118 = scmp.eq.s32.totalorder %s17, 7
      %p119 = scmp.ne.s32.totalorder %s114, %s116
      %p120 = scmp.eq.s32.totalorder %s17, 0
      %p121 = por %p119, %p120
      %p122 = scmp.ne.s32.totalorder %s114, %s116
      %p123 = scmp.eq.s32.totalorder %s22, 7
      %p124 = por %p122, %p123
      %p125 = scmp.ne.s32.totalorder %s116, %s117
      %p126 = scmp.eq.s32.totalorder %s22, 0
      %p127 = por %p125, %p126
      %p128 = scmp.ne.s32.totalorder %s116, %s117
      %p129 = scmp.eq.s32.totalorder %s23, 7
      %p130 = por %p128, %p129
      %p132 = scmp.ne.s32.totalorder %s117, %s131
      %p133 = scmp.eq.s32.totalorder %s23, 0
      %p134 = por %p132, %p133
      %s135 = ssub.s32 %s17, %s24
      %p136 = scmp.eq.s32.totalorder %s135, 0
      %s138 = sadd.s32 %s137, 1
      %s139 = scalar_select %p136, %s137, %s138
      %p142 = pneg %p136
      %p143 = scmp.eq.s32.totalorder %s17, 7
      %p144 = por %p142, %p143
      %p145 = scmp.ne.s32.totalorder %s137, %s140
      %p146 = scmp.eq.s32.totalorder %s17, 0
      %p147 = por %p145, %p146
      %p148 = scmp.ne.s32.totalorder %s137, %s140
      %p149 = scmp.eq.s32.totalorder %s22, 7
      %p150 = por %p148, %p149
      %p151 = scmp.ne.s32.totalorder %s140, %s141
      %p152 = scmp.eq.s32.totalorder %s22, 0
      %p153 = por %p151, %p152
      %p154 = scmp.ne.s32.totalorder %s140, %s141
      %p155 = scmp.eq.s32.totalorder %s23, 7
      %p156 = por %p154, %p155
      %p158 = scmp.ne.s32.totalorder %s141, %s157
      %p159 = scmp.eq.s32.totalorder %s23, 0
      %p160 = por %p158, %p159
      %p161 = scmp.le.s32.totalorder 1, %s17
      %p162 = scmp.lt.s32.totalorder %s17, 9
      %p163 = pnand %p161, %p162
      %p164 = pneg %p163
      // Predicated region
      $region9: #{tpu_custom_call.1} parent=5 // pred_check
        _
      $region10: #{tpu_custom_call.1} parent=5 // pred_check_branch
        %166 = sbr.rel (%p163) target = $region12
      $region11: #{tpu_custom_call.1} parent=5 // pred_region
        %s167 = ssub.s32 %s17, 1
        // Predicated region
        $region13: #{tpu_custom_call.1} parent=11 // pred_check
          %p168 = pneg %p64
        $region14: #{tpu_custom_call.1} parent=11 // pred_check_branch
          %170 = sbr.rel (%p168) target = $region16
        $region15: #{tpu_custom_call.1} parent=11 // pred_region
          _
        $region16: #{tpu_custom_call.1} parent=11 // pred_fallthru
          _
        // Predicated region
        $region17: #{tpu_custom_call.1} parent=11 // pred_check
          %p171 = pneg %p85
        $region18: #{tpu_custom_call.1} parent=11 // pred_check_branch
          %173 = sbr.rel (%p171) target = $region20
        $region19: #{tpu_custom_call.1} parent=11 // pred_region
          _
        $region20: #{tpu_custom_call.1} parent=11 // pred_fallthru
          _
        // Predicated region
        $region21: #{tpu_custom_call.1} parent=11 // pred_check
          %p174 = pneg %p106
        $region22: #{tpu_custom_call.1} parent=11 // pred_check_branch
          %176 = sbr.rel (%p174) target = $region24
        $region23: #{tpu_custom_call.1} parent=11 // pred_region
          _
        $region24: #{tpu_custom_call.1} parent=11 // pred_fallthru
          _
        // Predicated region
        $region25: #{tpu_custom_call.1} parent=11 // pred_check
          %p177 = pneg %p127
        $region26: #{tpu_custom_call.1} parent=11 // pred_check_branch
          %179 = sbr.rel (%p177) target = $region28
        $region27: #{tpu_custom_call.1} parent=11 // pred_region
          _
        $region28: #{tpu_custom_call.1} parent=11 // pred_fallthru
          _
      $region12: #{tpu_custom_call.1} parent=5 // pred_fallthru
        _
      %p180 = scmp.lt.s32.totalorder %s17, 8
      // Predicated region
      $region29: #{tpu_custom_call.1} parent=5 // pred_check
        %p181 = pneg %p180
      $region30: #{tpu_custom_call.1} parent=5 // pred_check_branch
        %183 = sbr.rel (%p181) target = $region32
      $region31: #{tpu_custom_call.1} parent=5 // pred_region
        // Predicated region
        $region33: #{tpu_custom_call.1} parent=31 // pred_check
          %p184 = pneg %p37
        $region34: #{tpu_custom_call.1} parent=31 // pred_check_branch
          %186 = sbr.rel (%p184) target = $region36
        $region35: #{tpu_custom_call.1} parent=31 // pred_region
          %s187 = sand.u32 %s27, 1
          %s188 = scalar_lea.sflag [#allocation3], %s187
          %s189 = sand.u32 %s27, 1
          %s190 = smul.addr %s189, 16
          %s191 = scalar_lea.vmem [#allocation2], %s190
          %s192 = smul.u32 2, %s17
          %s194 = ssub.s32 256, 256
          %195 = vsyncadd %s188, %s194
          %s196 = smul.addr %s192, 128
          %s197 = scalar_lea.hbm %s0, %s196
          %s198 = sshll.u32 %s191, 4
          %s199 = int_to_ptr.vmem [resolvable:$true] %s198
          %204 = dma.hbm_to_vmem [thread:$0]  %s197, 256, %s199, %s188, 128, 128, 8
        $region36: #{tpu_custom_call.1} parent=31 // pred_fallthru
          _
      $region32: #{tpu_custom_call.1} parent=5 // pred_fallthru
        _
      %p205 = scmp.le.s32.totalorder 1, %s17
      %p206 = scmp.lt.s32.totalorder %s17, 9
      %p207 = pnand %p205, %p206
      %p208 = pneg %p207
      // Predicated region
      $region37: #{tpu_custom_call.1} parent=5 // pred_check
        _
      $region38: #{tpu_custom_call.1} parent=5 // pred_check_branch
        %210 = sbr.rel (%p207) target = $region40
      $region39: #{tpu_custom_call.1} parent=5 // pred_region
        %s211 = ssub.s32 %s17, 1
        %s212 = sand.u32 %s30, 1
        %s213 = scalar_lea.sflag [#allocation3], %s212
        %s214 = sand.u32 %s30, 1
        %s215 = smul.addr %s214, 16
        %s216 = scalar_lea.vmem [#allocation2], %s215
        // Predicated region
        $region41: #{tpu_custom_call.1} parent=39 // pred_check
          %p217 = pneg %p43
        $region42: #{tpu_custom_call.1} parent=39 // pred_check_branch
          %219 = sbr.rel (%p217) target = $region44
        $region43: #{tpu_custom_call.1} parent=39 // pred_region
          %220 = dma.done %s213, 256
        $region44: #{tpu_custom_call.1} parent=39 // pred_fallthru
          _
        %s221 = sand.u32 %s30, 1
        %s222 = scalar_lea.sflag [#allocation3], %s221
        %s223 = sand.u32 %s30, 1
        %s224 = smul.addr %s223, 16
        %s225 = scalar_lea.vmem [#allocation2], %s224
        %p226 = pneg %p43
        %p227 = pneg %p40
        %p228 = pneg %p64
        %p229 = pneg %p61
        %p230 = pneg %p85
        %p231 = pneg %p82
        %p232 = pneg %p106
        %p233 = pneg %p103
        %p234 = pneg %p127
        %p235 = pneg %p124
        %p236 = pneg %p153
        %p237 = pneg %p150
        %s238 = sand.u32 %s140, 1
        %s239 = scalar_lea.sflag [#allocation4], %s238
        %s240 = sand.u32 %s140, 1
        %s241 = smul.addr %s240, 64
        %s242 = scalar_lea.vmem [#allocation5], %s241
        %s243 = smul.u32 2, %s22
        %s244 = smul.u32 2, %s22
        %v246 = vld [vmem:[%s216] sm:$0xff]
        %v247 = vld [vmem:[%s216 + $0x8] sm:$0xff]
        %v248 = vpack.c.bf16 %v247, %v246
        %v249 = vld [vmem:[%s1] sm:$0xff]
        %v250 = vld [vmem:[%s1 + $0x8] sm:$0xff]
        %v251 = vld [vmem:[%s1 + $0x10] sm:$0xff]
        %v252 = vld [vmem:[%s1 + $0x18] sm:$0xff]
        %v257 = vunpack.c.l.b16 %v249
        %v258 = vunpack.c.h.b16 %v249
        %v259 = vunpack.c.l.b16 %v250
        %v260 = vunpack.c.h.b16 %v250
        %v261 = vunpack.c.l.b16 %v251
        %v262 = vunpack.c.h.b16 %v251
        %v263 = vunpack.c.l.b16 %v252
        %v264 = vunpack.c.h.b16 %v252
        %v265 = vpack.c.b16 %v259, %v257
        %v266 = vpack.c.b16 %v260, %v258
        %v267 = vpack.c.b16 %v263, %v261
        %v268 = vpack.c.b16 %v264, %v262
        %vm273 = vcmask 261120
        %v275 = vsel %vm273, %v248, 0
        %277 = vmatprep.subr.bf16.mxu0 %v266
        %278 = vmatpush1.bf16.msra.mxu0 %v265
        %279 = vmatprep.subr.bf16.mxu0 %v268
        %280 = vmatpush1.bf16.msra.mxu0 %v267
        %281 = vmatprep.subr.bf16.mxu0 0
        %282 = vmatpush1.bf16.msra.mxu0 0
        %283 = vmatprep.subr.bf16.mxu0 0
        %284 = vmatpush1.bf16.msra.mxu0 0
        %285 = vmatprep.subr.bf16.mxu0 0
        %286 = vmatpush1.bf16.msra.mxu0 0
        %287 = vmatprep.subr.bf16.mxu0 0
        %288 = vmatpush1.bf16.msra.mxu0 0
        %289 = vmatprep.subr.bf16.mxu0 0
        %290 = vmatpush1.bf16.msra.mxu0 0
        %291 = vmatprep.subr.bf16.mxu0 0
        %292 = vmatpush1.bf16.msra.mxu0 0
        %293 = vmatprep.subr.bf16.mxu0 0
        %294 = vmatpush1.bf16.msra.mxu0 0
        %295 = vmatprep.subr.bf16.mxu0 0
        %296 = vmatpush1.bf16.msra.mxu0 0
        %297 = vmatprep.subr.bf16.mxu0 0
        %298 = vmatpush1.bf16.msra.mxu0 0
        %299 = vmatprep.subr.bf16.mxu0 0
        %300 = vmatpush1.bf16.msra.mxu0 0
        %301 = vmatprep.subr.bf16.mxu0 0
        %302 = vmatpush1.bf16.msra.mxu0 0
        %303 = vmatprep.subr.bf16.mxu0 0
        %304 = vmatpush1.bf16.msra.mxu0 0
        %305 = vmatprep.subr.bf16.mxu0 0
        %306 = vmatpush1.bf16.msra.mxu0 0
        %307 = vmatprep.subr.bf16.mxu0 0
        %308 = vmatpush1.bf16.msra.mxu0 0
        %309 = vmatprep.mubr.bf16.mxu0 0
        %310 = vmatmul.mubr.bf16.gmra.mrb[0].mxu0 %v275
        %v311 = vpop.f32.mrb[0].mxu0
        %v312 = vadd.f32 0.0, %v311
        %v313 = vpop.f32.mrb[0].mxu0
        %v314 = vadd.f32 0.0, %v313
        %v315 = vpop.f32.mrb[0].mxu0
        %v316 = vadd.f32 0.0, %v315
        %v317 = vpop.f32.mrb[0].mxu0
        %v318 = vadd.f32 0.0, %v317
        %319 = vdwg.mxu0
        %v320 = vmul.f32 %v314, 0.125
        %v321 = vmul.f32 %v318, 0.125
        %v322 = vmul.f32 %v312, %v312
        %v323 = vmul.f32 %v314, %v314
        %v324 = vmul.f32 %v316, %v316
        %v325 = vmul.f32 %v318, %v318
        %v326 = vpack.c.bf16 %v324, %v322
        %v327 = vpack.c.bf16 %v325, %v323
        %v328 = vld [vmem:[%s2] sm:$0xf]
        %v329 = vld [vmem:[%s2 + $0x4] sm:$0xf]
        %v330 = vld [vmem:[%s2 + $0x8] sm:$0xf]
        %v331 = vld [vmem:[%s2 + $0xc] sm:$0xf]
        %v332 = vld [vmem:[%s2 + $0x10] sm:$0xf]
        %v333 = vld [vmem:[%s2 + $0x14] sm:$0xf]
        %v334 = vld [vmem:[%s2 + $0x18] sm:$0xf]
        %v335 = vld [vmem:[%s2 + $0x1c] sm:$0xf]
        %v336 = vld [vmem:[%s2 + $0x20] sm:$0xf]
        %v337 = vld [vmem:[%s2 + $0x24] sm:$0xf]
        %v338 = vld [vmem:[%s2 + $0x28] sm:$0xf]
        %v339 = vld [vmem:[%s2 + $0x2c] sm:$0xf]
        %v340 = vld [vmem:[%s2 + $0x30] sm:$0xf]
        %v341 = vld [vmem:[%s2 + $0x34] sm:$0xf]
        %v342 = vld [vmem:[%s2 + $0x38] sm:$0xf]
        %v343 = vld [vmem:[%s2 + $0x3c] sm:$0xf]
        %v344 = vld [vmem:[%s2 + $0x40] sm:$0xf]
        %v345 = vld [vmem:[%s2 + $0x44] sm:$0xf]
        %v364 = vunpack.c.l.b16 %v328
        %v365 = vunpack.c.l.b16 %v329
        %v366 = vunpack.c.l.b16 %v330
        %v367 = vunpack.c.l.b16 %v331
        %v368 = vunpack.c.l.b16 %v332
        %v369 = vunpack.c.l.b16 %v333
        %v370 = vunpack.c.l.b16 %v334
        %v371 = vunpack.c.l.b16 %v335
        %v372 = vunpack.c.l.b16 %v336
        %v373 = vunpack.c.l.b16 %v337
        %v374 = vunpack.c.l.b16 %v338
        %v375 = vunpack.c.l.b16 %v339
        %v376 = vunpack.c.l.b16 %v340
        %v377 = vunpack.c.l.b16 %v341
        %v378 = vunpack.c.l.b16 %v342
        %v379 = vunpack.c.l.b16 %v343
        %v380 = vunpack.c.l.b16 %v344
        %v381 = vunpack.c.l.b16 %v345
        %v382 = vpack.c.b16 %v365, %v364
        %v383 = vpack.c.b16 %v367, %v366
        %v384 = vpack.c.b16 %v369, %v368
        %v385 = vpack.c.b16 %v371, %v370
        %v386 = vpack.c.b16 %v373, %v372
        %v387 = vpack.c.b16 %v375, %v374
        %v388 = vpack.c.b16 %v377, %v376
        %v389 = vpack.c.b16 %v379, %v378
        %v390 = vpack.c.b16 %v381, %v380
        %vm400 = vcmask 130048
        %v402 = vsel %vm400, %v327, 0
        %404 = vmatprep.subr.bf16.mxu0 0
        %405 = vmatpush1.bf16.msra.mxu0 %v382
        %406 = vmatprep.subr.bf16.mxu0 0
        %407 = vmatpush1.bf16.msra.mxu0 %v383
        %408 = vmatprep.subr.bf16.mxu0 0
        %409 = vmatpush1.bf16.msra.mxu0 %v384
        %410 = vmatprep.subr.bf16.mxu0 0
        %411 = vmatpush1.bf16.msra.mxu0 %v385
        %412 = vmatprep.subr.bf16.mxu0 0
        %413 = vmatpush1.bf16.msra.mxu0 %v386
        %414 = vmatprep.subr.bf16.mxu0 0
        %415 = vmatpush1.bf16.msra.mxu0 %v387
        %416 = vmatprep.subr.bf16.mxu0 0
        %417 = vmatpush1.bf16.msra.mxu0 %v388
        %418 = vmatprep.subr.bf16.mxu0 0
        %419 = vmatpush1.bf16.msra.mxu0 %v389
        %420 = vmatprep.subr.bf16.mxu0 0
        %421 = vmatpush1.bf16.msra.mxu0 %v390
        %422 = vmatprep.subr.bf16.mxu0 0
        %423 = vmatpush1.bf16.msra.mxu0 0
        %424 = vmatprep.subr.bf16.mxu0 0
        %425 = vmatpush1.bf16.msra.mxu0 0
        %426 = vmatprep.subr.bf16.mxu0 0
        %427 = vmatpush1.bf16.msra.mxu0 0
        %428 = vmatprep.subr.bf16.mxu0 0
        %429 = vmatpush1.bf16.msra.mxu0 0
        %430 = vmatprep.subr.bf16.mxu0 0
        %431 = vmatpush1.bf16.msra.mxu0 0
        %432 = vmatprep.subr.bf16.mxu0 0
        %433 = vmatpush1.bf16.msra.mxu0 0
        %434 = vmatprep.subr.bf16.mxu0 0
        %435 = vmatpush1.bf16.msra.mxu0 0
        %436 = vmatprep.mubr.bf16.mxu0 %v402
        %437 = vmatmul.mubr.bf16.gmra.mrb[0].mxu0 %v326
        %v438 = vpop.f32.mrb[0].mxu0
        %v439 = vadd.f32 0.0, %v438
        %v440 = vpop.f32.mrb[0].mxu0
        %v441 = vpop.f32.mrb[0].mxu0
        %v442 = vadd.f32 0.0, %v441
        %v443 = vpop.f32.mrb[0].mxu0
        %444 = vdwg.mxu0
        %v445 = vmul.f32 %v439, 0.125
        %v446 = vmul.f32 %v442, 0.125
        %v447 = vmul.f32 %v320, %v320
        %v448 = vmul.f32 %v321, %v321
        %v449 = vsub.f32 %v445, %v447
        %v450 = vsub.f32 %v446, %v448
        %v451 = vmax.f32 %v449, 0.0
        %v452 = vmax.f32 %v450, 0.0
        %v453 = vadd.f32 %v451, 1e-05
        %v454 = vadd.f32 %v452, 1e-05
        %v455 = vrsqrt.pop %v453
        %v456 = vrsqrt.pop %v454
        %v457 = vpack.c.bf16 %v456, %v455
        %v458 = vld [vmem:[%s3] sm:$0xff]
        %v459 = vld [vmem:[%s3 + $0x8] sm:$0xff]
        %v462 = vunpack.c.l.b16 %v458
        %v463 = vunpack.c.h.b16 %v458
        %v464 = vunpack.c.l.b16 %v459
        %v465 = vunpack.c.h.b16 %v459
        %v466 = vpack.c.b16 %v464, %v462
        %v467 = vpack.c.b16 %v465, %v463
        %v471 = vsel %vm400, %v457, 0
        %473 = vmatprep.subr.bf16.mxu0 %v467
        %474 = vmatpush1.bf16.msra.mxu0 %v466
        %475 = vmatprep.subr.bf16.mxu0 0
        %476 = vmatpush1.bf16.msra.mxu0 0
        %477 = vmatprep.subr.bf16.mxu0 0
        %478 = vmatpush1.bf16.msra.mxu0 0
        %479 = vmatprep.subr.bf16.mxu0 0
        %480 = vmatpush1.bf16.msra.mxu0 0
        %481 = vmatprep.subr.bf16.mxu0 0
        %482 = vmatpush1.bf16.msra.mxu0 0
        %483 = vmatprep.subr.bf16.mxu0 0
        %484 = vmatpush1.bf16.msra.mxu0 0
        %485 = vmatprep.subr.bf16.mxu0 0
        %486 = vmatpush1.bf16.msra.mxu0 0
        %487 = vmatprep.subr.bf16.mxu0 0
        %488 = vmatpush1.bf16.msra.mxu0 0
        %489 = vmatprep.subr.bf16.mxu0 0
        %490 = vmatpush1.bf16.msra.mxu0 0
        %491 = vmatprep.subr.bf16.mxu0 0
        %492 = vmatpush1.bf16.msra.mxu0 0
        %493 = vmatprep.subr.bf16.mxu0 0
        %494 = vmatpush1.bf16.msra.mxu0 0
        %495 = vmatprep.subr.bf16.mxu0 0
        %496 = vmatpush1.bf16.msra.mxu0 0
        %497 = vmatprep.subr.bf16.mxu0 0
        %498 = vmatpush1.bf16.msra.mxu0 0
        %499 = vmatprep.subr.bf16.mxu0 0
        %500 = vmatpush1.bf16.msra.mxu0 0
        %501 = vmatprep.subr.bf16.mxu0 0
        %502 = vmatpush1.bf16.msra.mxu0 0
        %503 = vmatprep.subr.bf16.mxu0 0
        %504 = vmatpush1.bf16.msra.mxu0 0
        %505 = vmatprep.mubr.bf16.mxu0 0
        %506 = vmatmul.mubr.bf16.gmra.mrb[0].mxu0 %v471
        %v507 = vpop.f32.mrb[0].mxu0
        %v508 = vadd.f32 0.0, %v507
        %v509 = vpop.f32.mrb[0].mxu0
        %v510 = vpop.f32.mrb[0].mxu0
        %v511 = vadd.f32 0.0, %v510
        %v512 = vpop.f32.mrb[0].mxu0
        %513 = vdwg.mxu0
        %v514 = vmul.f32 %v320, %v455
        %v515 = vmul.f32 %v321, %v456
        %v516 = vpack.c.bf16 %v515, %v514
        %v518 = vsel %vm400, %v516, 0
        %520 = vmatprep.subr.bf16.mxu0 %v467
        %521 = vmatpush1.bf16.msra.mxu0 %v466
        %522 = vmatprep.subr.bf16.mxu0 0
        %523 = vmatpush1.bf16.msra.mxu0 0
        %524 = vmatprep.subr.bf16.mxu0 0
        %525 = vmatpush1.bf16.msra.mxu0 0
        %526 = vmatprep.subr.bf16.mxu0 0
        %527 = vmatpush1.bf16.msra.mxu0 0
        %528 = vmatprep.subr.bf16.mxu0 0
        %529 = vmatpush1.bf16.msra.mxu0 0
        %530 = vmatprep.subr.bf16.mxu0 0
        %531 = vmatpush1.bf16.msra.mxu0 0
        %532 = vmatprep.subr.bf16.mxu0 0
        %533 = vmatpush1.bf16.msra.mxu0 0
        %534 = vmatprep.subr.bf16.mxu0 0
        %535 = vmatpush1.bf16.msra.mxu0 0
        %536 = vmatprep.subr.bf16.mxu0 0
        %537 = vmatpush1.bf16.msra.mxu0 0
        %538 = vmatprep.subr.bf16.mxu0 0
        %539 = vmatpush1.bf16.msra.mxu0 0
        %540 = vmatprep.subr.bf16.mxu0 0
        %541 = vmatpush1.bf16.msra.mxu0 0
        %542 = vmatprep.subr.bf16.mxu0 0
        %543 = vmatpush1.bf16.msra.mxu0 0
        %544 = vmatprep.subr.bf16.mxu0 0
        %545 = vmatpush1.bf16.msra.mxu0 0
        %546 = vmatprep.subr.bf16.mxu0 0
        %547 = vmatpush1.bf16.msra.mxu0 0
        %548 = vmatprep.subr.bf16.mxu0 0
        %549 = vmatpush1.bf16.msra.mxu0 0
        %550 = vmatprep.subr.bf16.mxu0 0
        %551 = vmatpush1.bf16.msra.mxu0 0
        %552 = vmatprep.mubr.bf16.mxu0 0
        %553 = vmatmul.mubr.bf16.gmra.mrb[0].mxu0 %v518
        %v554 = vpop.f32.mrb[0].mxu0
        %v555 = vadd.f32 0.0, %v554
        %v556 = vpop.f32.mrb[0].mxu0
        %v557 = vpop.f32.mrb[0].mxu0
        %v558 = vadd.f32 0.0, %v557
        %v559 = vpop.f32.mrb[0].mxu0
        %560 = vdwg.mxu0
        %v561 = vmul.f32 %v312, %v508
        %v562 = vmul.f32 %v316, %v511
        %v563 = vld [vmem:[%s4] sm:$0x3]
        %v565 = vlaneseq
        %v566 = vshrl.u32 %v565, 7
        %v567 = vsub.s32 0, %v566
        %v568 = vrot.slane %v563, %v567
        %v570 = vsub.f32 %v568, %v555
        %v571 = vsub.f32 %v568, %v558
        %v572 = vadd.f32 %v561, %v570
        %v573 = vadd.f32 %v562, %v571
        %574 = vst.msk [vmem:[%s242] sm:$0xff] %vm273, %v572
        %575 = vst.msk [vmem:[%s242 + $0x20] sm:$0xff] %vm273, %v573
        %578 = vrot.lane.b32.xlu0 %v572, 96
        %v579 = vpop.permute.xlu0 %578
        %580 = vrot.lane.b32.xlu0 %v573, 96
        %v581 = vpop.permute.xlu0 %580
        %s584 = scalar_lea.vmem %s242, 8 [#allocation5]
        %585 = vst.msk [vmem:[%s584] sm:$0xff] %vm273, %v579
        %586 = vst.msk [vmem:[%s584 + $0x20] sm:$0xff] %vm273, %v581
        %587 = vrot.lane.b32.xlu0 %v572, 64
        %v588 = vpop.permute.xlu0 %587
        %589 = vrot.lane.b32.xlu0 %v573, 64
        %v590 = vpop.permute.xlu0 %589
        %s593 = scalar_lea.vmem %s242, 16 [#allocation5]
        %594 = vst.msk [vmem:[%s593] sm:$0xff] %vm273, %v588
        %595 = vst.msk [vmem:[%s593 + $0x20] sm:$0xff] %vm273, %v590
        %596 = vrot.lane.b32.xlu0 %v572, 32
        %v597 = vpop.permute.xlu0 %596
        %598 = vrot.lane.b32.xlu0 %v573, 32
        %v599 = vpop.permute.xlu0 %598
        %s602 = scalar_lea.vmem %s242, 24 [#allocation5]
        %603 = vst.msk [vmem:[%s602] sm:$0xff] %vm273, %v597
        %604 = vst.msk [vmem:[%s602 + $0x20] sm:$0xff] %vm273, %v599
        %s605 = sand.u32 %s140, 1
        %s606 = scalar_lea.sflag [#allocation4], %s605
        %s607 = sand.u32 %s140, 1
        %s608 = smul.addr %s607, 64
        %s609 = scalar_lea.vmem [#allocation5], %s608
        // Predicated region
        $region45: #{tpu_custom_call.1} parent=39 // pred_check
          %p610 = pneg %p150
        $region46: #{tpu_custom_call.1} parent=39 // pred_check_branch
          %612 = sbr.rel (%p610) target = $region48
        $region47: #{tpu_custom_call.1} parent=39 // pred_region
          %s613 = smul.u32 2, %s22
          %s615 = ssub.s32 1024, 1024
          %616 = vsyncadd %s606, %s615
          %s617 = smul.addr %s613, 4
          %s618 = smul.addr %s617, 128
          %s619 = scalar_lea.hbm %s5, %s618
          %s620 = sshll.u32 %s609, 4
          %s621 = int_to_ptr.vmem [resolvable:$true] %s620
          %626 = dma.vmem_to_hbm [thread:$0]  %s621, 1024, %s619, %s606, 128, 128, 8
        $region48: #{tpu_custom_call.1} parent=39 // pred_fallthru
          _
      $region40: #{tpu_custom_call.1} parent=5 // pred_fallthru
        _
      %p627 = scmp.le.s32.totalorder 2, %s17
      // Predicated region
      $region49: #{tpu_custom_call.1} parent=5 // pred_check
        %p628 = pneg %p627
      $region50: #{tpu_custom_call.1} parent=5 // pred_check_branch
        %630 = sbr.rel (%p628) target = $region52
      $region51: #{tpu_custom_call.1} parent=5 // pred_region
        %s631 = ssub.s32 %s17, 2
        // Predicated region
        $region53: #{tpu_custom_call.1} parent=51 // pred_check
          %p632 = pneg %p156
        $region54: #{tpu_custom_call.1} parent=51 // pred_check_branch
          %634 = sbr.rel (%p632) target = $region56
        $region55: #{tpu_custom_call.1} parent=51 // pred_region
          %s635 = sand.u32 %s141, 1
          %s636 = scalar_lea.sflag [#allocation4], %s635
          %s637 = sand.u32 %s141, 1
          %s638 = smul.addr %s637, 64
          %s639 = scalar_lea.vmem [#allocation5], %s638
          %640 = dma.done %s636, 1024
        $region56: #{tpu_custom_call.1} parent=51 // pred_fallthru
          _
      $region52: #{tpu_custom_call.1} parent=5 // pred_fallthru
        _
    $region6: #{tpu_custom_call.1} parent=1 // loop_footer
      %s21 = sadd.s32 1, %s17
    $region7: #{tpu_custom_call.1} parent=1 // loop_footer_branch
      %16 = sbr.rel target = $region3
    $region8: #{tpu_custom_call.1} parent=1 // loop_exit
      _
    %641 = vsyncpa [#allocation3], 1
    %s642 = scalar_lea.sflag [#allocation3], 1
    %643 = vsyncpa %s642, 1
    %644 = vsyncpa [#allocation4], 1
    %s645 = scalar_lea.sflag [#allocation4], 1
    %646 = vsyncpa %s645, 1

</llo_original>
